<compile_context>
chip_gen: v7x
topology: tpu7x:2x2x1
jax: 0.10.0
libtpu: 0.0.40
codegen_flags: <defaults>
</compile_context>

<pallas_src>
import functools

import jax
import jax.numpy as jnp
from jax.experimental import pallas as pl
from jax.experimental.pallas import tpu as pltpu


# ---------------------------------------------------------------------------
# Kernel
# ---------------------------------------------------------------------------
def _fused_kernel(emd_ref, w1t_ref, b1_ref, w2t_ref, b2_ref, w_ref, b_ref,
                  out_ref):
    """One lane-dense N block of:  out = mlp(emd) @ W_flat + b_flat.

    The tiny MLP operands are grid-invariant (DMA'd once, kept resident) and
    the recompute (~2*B*H*(E+H) flops) hides under the weight-tile DMA.
    """
    # feat = relu(emd @ W1^T + b1) @ W2^T + b2   (weights pre-transposed), f32.
    h = jnp.dot(emd_ref[...], w1t_ref[...], preferred_element_type=jnp.float32)
    h = jnp.maximum(h + b1_ref[...], 0.0)
    feat = jnp.dot(h, w2t_ref[...], preferred_element_type=jnp.float32)
    feat = feat + b2_ref[...]

    # Cast the tiny (B,H) activation down to the weight dtype; never upcast
    # the big weight tile (keeps VMEM free for a larger tn, feeds the MXU
    # bf16 x bf16 -> f32 directly).
    feat = feat.astype(w_ref.dtype)
    y = jnp.dot(feat, w_ref[...], preferred_element_type=jnp.float32)
    out_ref[...] = y + b_ref[...]


# ---------------------------------------------------------------------------
# Sizing helpers (host-side, construction time)
# ---------------------------------------------------------------------------
def _round_up(x, m):
    return ((x + m - 1) // m) * m


def _vmem_capacity_bytes():
    try:
        return int(pltpu.get_tpu_info().vmem_capacity_bytes)
    except Exception:
        return 64 << 20        # conservative fallback (v7x per-core VMEM)


def _resident_bytes(b_max, E, H):
    """VMEM held by grid-invariant operands (sublane/lane padded, x2 buffers)."""
    Bp, Ep, Hp = (_round_up(max(v, 1), 8) for v in (b_max, E, H))
    El, Hl = (_round_up(max(v, 1), 128) for v in (E, H))
    return 2 * 4 * (Bp * El + Ep * Hl + 8 * Hl + Hp * Hl + 8 * Hl)


def _pick_tn(total_n, H, w_itemsize, b_max, vmem_limit, resident_bytes):
    """Largest lane-dense (multiple-of-128) N tile that fits the VMEM budget."""
    Hp = _round_up(max(H, 1), 8)
    Bp = _round_up(max(b_max, 1), 8)
    # Bytes per output column for one pipeline step, double-buffered,
    # sublane-padded: weight tile (Hp rows), bias tile (pads to 8 rows),
    # output tile (Bp rows).
    per_col = 2 * Hp * w_itemsize + 2 * 8 * 4 + 2 * Bp * 4
    budget = max(vmem_limit - resident_bytes - (4 << 20), per_col * 128)
    tn_cap = max((budget // per_col) // 128 * 128, 128)
    return int(min(tn_cap, _round_up(total_n, 128)))


# ---------------------------------------------------------------------------
# Forward
# ---------------------------------------------------------------------------
@functools.partial(jax.jit,
                   static_argnames=("L", "OUT", "total_n", "tn", "vmem_limit"))
def shakes_hyper_forward(emd, w1t, b1, w2t, b2, w_flat, b_flat, *,
                         L, OUT, total_n, tn, vmem_limit):
    """emd:(B,E); w1t:(E,H); b1:(1,H); w2t:(H,H); b2:(1,H);
       w_flat:(H, Np); b_flat:(1, Np) with Np = nblk*tn >= L*OUT (zero padded).
       Returns (L, B, OUT) float32."""
    B, E = emd.shape
    H = w1t.shape[1]
    padded_n = w_flat.shape[1]
    assert padded_n % tn == 0 and padded_n >= total_n == L * OUT
    nblk = padded_n // tn

    w_bytes = w_flat.size * jnp.dtype(w_flat.dtype).itemsize
    flops = 2 * B * padded_n * H + nblk * (2 * B * E * H + 2 * B * H * H)
    bytes_accessed = (w_bytes + padded_n * 4 + B * padded_n * 4
                      + 4 * (emd.size + w1t.size + b1.size + w2t.size + b2.size))

    out_flat = pl.pallas_call(
        _fused_kernel,
        out_shape=jax.ShapeDtypeStruct((B, padded_n), jnp.float32),
        grid=(nblk,),
        in_specs=[
            pl.BlockSpec((B, E), lambda j: (0, 0)),    # emd        (resident)
            pl.BlockSpec((E, H), lambda j: (0, 0)),    # W1^T       (resident)
            pl.BlockSpec((1, H), lambda j: (0, 0)),    # b1         (resident)
            pl.BlockSpec((H, H), lambda j: (0, 0)),    # W2^T       (resident)
            pl.BlockSpec((1, H), lambda j: (0, 0)),    # b2         (resident)
            pl.BlockSpec((H, tn), lambda j: (0, j)),   # fused head weights
            pl.BlockSpec((1, tn), lambda j: (0, j)),   # fused head bias
        ],
        out_specs=pl.BlockSpec((B, tn), lambda j: (0, j)),
        compiler_params=pltpu.CompilerParams(
            dimension_semantics=("parallel",),          # megacore-friendly
            vmem_limit_bytes=int(vmem_limit)),
        cost_estimate=pl.CostEstimate(flops=int(flops), transcendentals=0,
                                      bytes_accessed=int(bytes_accessed)),
    )(emd, w1t, b1, w2t, b2, w_flat, b_flat)

    # Drop padded columns; (B, L*OUT) lane-dense slab -> (L, B, OUT).
    out = out_flat[:, :total_n]
    return out.reshape(B, L, OUT).transpose(1, 0, 2)


# ---------------------------------------------------------------------------
# Module port
# ---------------------------------------------------------------------------
class ShakesHyperPallas:
    """JAX/Pallas port of ShakesHyper forward (test=False and test=True paths)."""

    def __init__(self, n_nodes, embedding_dim, hidden_dim, dim, client_sample,
                 heads=8, dim_head=64, n_hidden=1, depth=6, seed=0,
                 weight_dtype=jnp.bfloat16):
        assert n_hidden == 1, "kernel implements the default n_hidden=1 MLP"
        self.dim = dim
        self.inner_dim = dim_head * heads
        self.depth = depth
        self.client_sample = client_sample
        out_dim = dim * heads * dim_head
        self.out_dim = out_dim

        key = jax.random.PRNGKey(seed)
        ks = jax.random.split(key, 8)
        sc = 0.05
        self.embeddings = sc * jax.random.normal(ks[0], (n_nodes, embedding_dim), jnp.float32)
        self.w1 = sc * jax.random.normal(ks[1], (hidden_dim, embedding_dim), jnp.float32)
        self.b1 = sc * jax.random.normal(ks[2], (hidden_dim,), jnp.float32)
        self.w2 = sc * jax.random.normal(ks[3], (hidden_dim, hidden_dim), jnp.float32)
        self.b2 = sc * jax.random.normal(ks[4], (hidden_dim,), jnp.float32)
        # Stacked hyper-head weights: layer index l = 3*d + j, j in {0:q, 1:k, 2:v}.
        L = 3 * depth
        self.w_all = sc * jax.random.normal(ks[5], (L, out_dim, hidden_dim), jnp.float32)
        self.b_all = sc * jax.random.normal(ks[6], (L, out_dim), jnp.float32)

        # ---- one-time layout preparation -----------------------------------
        self.w1t = jnp.transpose(self.w1)                        # (E, H)
        self.w2t = jnp.transpose(self.w2)                        # (H, H)
        self.b1r = self.b1.reshape(1, hidden_dim)
        self.b2r = self.b2.reshape(1, hidden_dim)

        self.L = L
        self.total_n = L * out_dim
        w_itemsize = jnp.dtype(weight_dtype).itemsize

        # VMEM budget per core (~85% of physical: ~54 MiB v7x, ~109 MiB v5e/v6e).
        self.vmem_limit = int(_vmem_capacity_bytes() * 0.85)
        resident = _resident_bytes(max(client_sample, 1), embedding_dim, hidden_dim)
        self.tn = _pick_tn(self.total_n, hidden_dim, w_itemsize,
                           max(client_sample, 1), self.vmem_limit, resident)
        padded_n = _round_up(self.total_n, self.tn)
        self.padded_n = padded_n

        # Flatten all 3*depth head linears into one (H, L*OUT) weight matrix so
        # OUT sits on lanes; zero-pad columns so the tile size never depends on
        # the L*OUT factorization.  bf16 storage halves HBM weight traffic;
        # bias stays f32 (tiny) and accumulation is f32 on the MXU.
        w_flat = jnp.transpose(self.w_all, (2, 0, 1)).reshape(hidden_dim, self.total_n)
        b_flat = self.b_all.reshape(1, self.total_n)
        pad = padded_n - self.total_n
        if pad:
            w_flat = jnp.pad(w_flat, ((0, 0), (0, pad)))
            b_flat = jnp.pad(b_flat, ((0, 0), (0, pad)))
        self.w_flat = w_flat.astype(weight_dtype)                # (H, padded_n)
        self.b_flat = b_flat.astype(jnp.float32)                 # (1, padded_n)

    def __call__(self, idx, test):
        # Embedding lookup is index glue, done in plain JAX.
        emd = jnp.take(self.embeddings, jnp.asarray(idx), axis=0)   # (B, E)
        if emd.ndim == 1:
            emd = emd[None, :]

        out = shakes_hyper_forward(
            emd, self.w1t, self.b1r, self.w2t, self.b2r,
            self.w_flat, self.b_flat,
            L=self.L, OUT=self.out_dim, total_n=self.total_n,
            tn=self.tn, vmem_limit=self.vmem_limit)                 # (L, B, OUT)
        # NOTE: no host sync here; callers block when they need the values.

        if not test:
            weights = [dict() for _ in range(self.client_sample)]
            for d in range(self.depth):
                q = out[3 * d + 0].reshape(-1, self.inner_dim, self.dim)
                k = out[3 * d + 1].reshape(-1, self.inner_dim, self.dim)
                v = out[3 * d + 2].reshape(-1, self.inner_dim, self.dim)
                for n in range(self.client_sample):
                    weights[n][f'encoder.layer_stack.{d}.slf_attn.w_qs.weight'] = q[n]
                    weights[n][f'encoder.layer_stack.{d}.slf_attn.w_ks.weight'] = k[n]
                    weights[n][f'encoder.layer_stack.{d}.slf_attn.w_vs.weight'] = v[n]
            return weights, out, emd
        else:
            weights = dict()
            for d in range(self.depth):
                weights[f'encoder.layer_stack.{d}.slf_attn.w_qs.weight'] = \
                    out[3 * d + 0].reshape(self.inner_dim, self.dim)
                weights[f'encoder.layer_stack.{d}.slf_attn.w_ks.weight'] = \
                    out[3 * d + 1].reshape(self.inner_dim, self.dim)
                weights[f'encoder.layer_stack.{d}.slf_attn.w_vs.weight'] = \
                    out[3 * d + 2].reshape(self.inner_dim, self.dim)
            return weights, out, emd


# ---------------------------------------------------------------------------
# Pure-JAX reference (torch semantics, f32)
# ---------------------------------------------------------------------------
def _reference(emd, w1, b1, w2, b2, w_all, b_all):
    h = jnp.maximum(emd @ w1.T + b1, 0.0)
    feat = h @ w2.T + b2
    return jnp.einsum('bh,loh->lbo', feat, w_all) + b_all[:, None, :]   # (L, B, OUT)


if __name__ == "__main__":
    # Small config: n_nodes=8, embedding_dim=32, hidden_dim=32, dim=16,
    # heads=4, dim_head=8 -> inner_dim=32, per-layer OUT = 16*4*8 = 512,
    # fused weight matrix (H=32, L*OUT=9216).  Fits VMEM => tn=9216, grid=(1,).
    n_nodes, embedding_dim, hidden_dim = 8, 32, 32
    dim, heads, dim_head, depth = 16, 4, 8, 6
    client_sample = 2

    # Default model: bf16 weights (HBM-optimal generation path).
    model = ShakesHyperPallas(n_nodes, embedding_dim, hidden_dim, dim,
                              client_sample, heads=heads, dim_head=dim_head,
                              n_hidden=1, depth=depth, seed=0)

    idx = jnp.array([1, 5], dtype=jnp.int32)   # client_sample node indices

    # Training path (test=False): list of per-client weight dicts.
    weights_train, raw_out, emd = model(idx, test=False)
    raw_out = jax.block_until_ready(raw_out)

    ref = _reference(emd, model.w1, model.b1, model.w2, model.b2,
                     model.w_all, model.b_all)
    assert raw_out.shape == ref.shape
    assert jnp.allclose(raw_out, ref, atol=5e-3, rtol=5e-2), \
        "bf16-weight kernel mismatch vs f32 reference"

    assert len(weights_train) == client_sample
    w0 = weights_train[0]['encoder.layer_stack.0.slf_attn.w_qs.weight']
    assert w0.shape == (heads * dim_head, dim)

    # f32-weight variant: tighter numerical check of the kernel mechanics,
    # exercised on the eval path (test=True, batch of 1).
    model32 = ShakesHyperPallas(n_nodes, embedding_dim, hidden_dim, dim,
                                client_sample, heads=heads, dim_head=dim_head,
                                n_hidden=1, depth=depth, seed=0,
                                weight_dtype=jnp.float32)
    weights_test, raw_out_t, emd_t = model32(jnp.array([3], dtype=jnp.int32), test=True)
    raw_out_t = jax.block_until_ready(raw_out_t)
    ref_t = _reference(emd_t, model32.w1, model32.b1, model32.w2, model32.b2,
                       model32.w_all, model32.b_all)
    assert jnp.allclose(raw_out_t, ref_t, atol=2e-3, rtol=2e-2), \
        "f32-weight kernel mismatch vs reference (test path)"
    assert weights_test['encoder.layer_stack.5.slf_attn.w_vs.weight'].shape == \
        (heads * dim_head, dim)

    print("KERNEL_OK")
</pallas_src>

<mosaic_0001>
module attributes {stable_mosaic.version = 11 : i64} {
  func.func @_fused_kernel(%arg0: i32, %arg1: memref<2x32xf32, #tpu.memory_space<vmem>>, %arg2: memref<32x32xf32, #tpu.memory_space<vmem>>, %arg3: memref<1x32xf32, #tpu.memory_space<vmem>>, %arg4: memref<32x32xf32, #tpu.memory_space<vmem>>, %arg5: memref<1x32xf32, #tpu.memory_space<vmem>>, %arg6: memref<32x9216xbf16, #tpu.memory_space<vmem>>, %arg7: memref<1x9216xf32, #tpu.memory_space<vmem>>, %arg8: memref<2x9216xf32, #tpu.memory_space<vmem>>) attributes {dimension_semantics = [#tpu.dimension_semantics<parallel>], iteration_bounds = array<i64: 1>, scalar_prefetch = 0 : i64, scratch_operands = 0 : i64, tpu.core_type = #tpu.core_type<tc>, window_params = [{pipeline_mode = #tpu.pipeline_mode<synchronous>, transform_indices = @transform_0, window_bounds = array<i64: 2, 32>}, {pipeline_mode = #tpu.pipeline_mode<synchronous>, transform_indices = @transform_1, window_bounds = array<i64: 32, 32>}, {pipeline_mode = #tpu.pipeline_mode<synchronous>, transform_indices = @transform_2, window_bounds = array<i64: 1, 32>}, {pipeline_mode = #tpu.pipeline_mode<synchronous>, transform_indices = @transform_3, window_bounds = array<i64: 32, 32>}, {pipeline_mode = #tpu.pipeline_mode<synchronous>, transform_indices = @transform_4, window_bounds = array<i64: 1, 32>}, {transform_indices = @transform_5, window_bounds = array<i64: 32, 9216>}, {transform_indices = @transform_6, window_bounds = array<i64: 1, 9216>}, {transform_indices = @transform_7, window_bounds = array<i64: 2, 9216>}]} {
    %c0 = arith.constant 0 : index
    %c0_0 = arith.constant 0 : index
    %0 = vector.load %arg1[%c0, %c0_0] : memref<2x32xf32, #tpu.memory_space<vmem>>, vector<2x32xf32>
    %c0_1 = arith.constant 0 : index
    %c0_2 = arith.constant 0 : index
    %1 = vector.load %arg2[%c0_1, %c0_2] : memref<32x32xf32, #tpu.memory_space<vmem>>, vector<32x32xf32>
    %cst = arith.constant dense<0.000000e+00> : vector<2x32xf32>
    %2 = tpu.matmul %0, %1, %cst {dimension_numbers = #tpu.dot_dimension_numbers<[1], [0], [0], [1], [0, 0, 1, 1], [], []>} : vector<2x32xf32>, vector<32x32xf32>, vector<2x32xf32> -> vector<2x32xf32>
    %c0_3 = arith.constant 0 : index
    %c0_4 = arith.constant 0 : index
    %3 = vector.load %arg3[%c0_3, %c0_4] : memref<1x32xf32, #tpu.memory_space<vmem>>, vector<1x32xf32>
    %4 = vector.broadcast %3 : vector<1x32xf32> to vector<2x32xf32>
    %5 = arith.addf %2, %4 : vector<2x32xf32>
    %cst_5 = arith.constant 0.000000e+00 : f32
    %6 = vector.broadcast %cst_5 : f32 to vector<2x32xf32>
    %7 = arith.maximumf %5, %6 : vector<2x32xf32>
    %c0_6 = arith.constant 0 : index
    %c0_7 = arith.constant 0 : index
    %8 = vector.load %arg4[%c0_6, %c0_7] : memref<32x32xf32, #tpu.memory_space<vmem>>, vector<32x32xf32>
    %cst_8 = arith.constant dense<0.000000e+00> : vector<2x32xf32>
    %9 = tpu.matmul %7, %8, %cst_8 {dimension_numbers = #tpu.dot_dimension_numbers<[1], [0], [0], [1], [0, 0, 1, 1], [], []>} : vector<2x32xf32>, vector<32x32xf32>, vector<2x32xf32> -> vector<2x32xf32>
    %c0_9 = arith.constant 0 : index
    %c0_10 = arith.constant 0 : index
    %10 = vector.load %arg5[%c0_9, %c0_10] : memref<1x32xf32, #tpu.memory_space<vmem>>, vector<1x32xf32>
    %11 = vector.broadcast %10 : vector<1x32xf32> to vector<2x32xf32>
    %12 = arith.addf %9, %11 : vector<2x32xf32>
    %13 = arith.truncf %12 : vector<2x32xf32> to vector<2x32xbf16>
    %c0_11 = arith.constant 0 : index
    %c0_12 = arith.constant 0 : index
    %14 = vector.load %arg6[%c0_11, %c0_12] : memref<32x9216xbf16, #tpu.memory_space<vmem>>, vector<32x9216xbf16>
    %cst_13 = arith.constant dense<0.000000e+00> : vector<2x9216xf32>
    %15 = tpu.matmul %13, %14, %cst_13 {dimension_numbers = #tpu.dot_dimension_numbers<[1], [0], [0], [1], [0, 0, 1, 1], [], []>} : vector<2x32xbf16>, vector<32x9216xbf16>, vector<2x9216xf32> -> vector<2x9216xf32>
    %c0_14 = arith.constant 0 : index
    %c0_15 = arith.constant 0 : index
    %16 = vector.load %arg7[%c0_14, %c0_15] : memref<1x9216xf32, #tpu.memory_space<vmem>>, vector<1x9216xf32>
    %17 = vector.broadcast %16 : vector<1x9216xf32> to vector<2x9216xf32>
    %18 = arith.addf %15, %17 : vector<2x9216xf32>
    %c0_16 = arith.constant 0 : index
    %c0_17 = arith.constant 0 : index
    %19 = vector.load %arg8[%c0_16, %c0_17] : memref<2x9216xf32, #tpu.memory_space<vmem>>, vector<2x9216xf32>
    tpu.vector_store %arg8[%c0_16, %c0_17], %18 {strides = array<i32>} : memref<2x9216xf32, #tpu.memory_space<vmem>>, vector<2x9216xf32>,
    return
  }
  func.func @transform_0(%arg0: i32) -> (i32, i32) {
    %c0_i32 = arith.constant 0 : i32
    %c0_i32_0 = arith.constant 0 : i32
    %c0_i32_1 = arith.constant 0 : i32
    return %c0_i32, %c0_i32_0 : i32, i32
  }
  func.func @transform_1(%arg0: i32) -> (i32, i32) {
    %c0_i32 = arith.constant 0 : i32
    %c0_i32_0 = arith.constant 0 : i32
    %c0_i32_1 = arith.constant 0 : i32
    return %c0_i32, %c0_i32_0 : i32, i32
  }
  func.func @transform_2(%arg0: i32) -> (i32, i32) {
    %c0_i32 = arith.constant 0 : i32
    %c0_i32_0 = arith.constant 0 : i32
    %c0_i32_1 = arith.constant 0 : i32
    return %c0_i32, %c0_i32_0 : i32, i32
  }
  func.func @transform_3(%arg0: i32) -> (i32, i32) {
    %c0_i32 = arith.constant 0 : i32
    %c0_i32_0 = arith.constant 0 : i32
    %c0_i32_1 = arith.constant 0 : i32
    return %c0_i32, %c0_i32_0 : i32, i32
  }
  func.func @transform_4(%arg0: i32) -> (i32, i32) {
    %c0_i32 = arith.constant 0 : i32
    %c0_i32_0 = arith.constant 0 : i32
    %c0_i32_1 = arith.constant 0 : i32
    return %c0_i32, %c0_i32_0 : i32, i32
  }
  func.func @transform_5(%arg0: i32) -> (i32, i32) {
    %c0_i32 = arith.constant 0 : i32
    %c0_i32_0 = arith.constant 0 : i32
    return %c0_i32, %arg0 : i32, i32
  }
  func.func @transform_6(%arg0: i32) -> (i32, i32) {
    %c0_i32 = arith.constant 0 : i32
    %c0_i32_0 = arith.constant 0 : i32
    return %c0_i32, %arg0 : i32, i32
  }
  func.func @transform_7(%arg0: i32) -> (i32, i32) {
    %c0_i32 = arith.constant 0 : i32
    %c0_i32_0 = arith.constant 0 : i32
    return %c0_i32, %arg0 : i32, i32
  }
}

</mosaic_0001>

<llo_original>
// kernel: shakes_hyper_forward.1
$region0: #{shakes_hyper_forward.1}
  #allocation0 [shape = 'u32[]', space=smem, size = 0x4, offset = 0x4, fixed_abs, tag = 'smem constant byte address 0x4 - core index']
  #allocation1 [shape = 'u32[144,128]{1,0:T(1,128)}', space=vmem, size = 0x12000, scoped, tag = 'internal scratch']
  %s0 = inlined_call_operand.hbm [shape: f32[2,32], index: 0, kind: input, shape index: {}]
  %s1 = inlined_call_operand.hbm [shape: f32[32,32], index: 1, kind: input, shape index: {}]
  %s2 = inlined_call_operand.vmem [shape: f32[1,32], index: 2, kind: input, shape index: {}]
  %s3 = inlined_call_operand.hbm [shape: f32[32,32], index: 3, kind: input, shape index: {}]
  %s4 = inlined_call_operand.vmem [shape: f32[1,32], index: 4, kind: input, shape index: {}]
  %s5 = inlined_call_operand.hbm [shape: bf16[32,9216], index: 5, kind: input, shape index: {}]
  %s6 = inlined_call_operand.hbm [shape: f32[1,9216], index: 6, kind: input, shape index: {}]
  %s7 = inlined_call_operand.vmem [shape: f32[2,9216], index: 7, kind: output, shape index: {}]
  %s8 = sld [smem:[#allocation0]]
  $region58: #{shakes_hyper_forward.1} parent=0
    _
  %s10 = ssub.s32 1, %s8
  %s11 = scalar_select 0, %s10, %s8
  $region1: #{shakes_hyper_forward.1} parent=0
    #allocation2 [shape = 'u8[1024]{0}', space=vmem, size = 0x400, scoped, tag = 'input window, operand 0, single buffered']
    #allocation3 [shape = 's32[1]{0}', space=sflag, size = 0x4, scoped, tag = 'scoped memory for shakes_hyper_forward.1']
    #allocation4 [shape = 'u8[16384]{0}', space=vmem, size = 0x4000, scoped, tag = 'input window, operand 1, single buffered']
    #allocation5 [shape = 's32[1]{0}', space=sflag, size = 0x4, scoped, tag = 'scoped memory for shakes_hyper_forward.1']
    #allocation6 [shape = 'u8[16384]{0}', space=vmem, size = 0x4000, scoped, tag = 'input window, operand 3, single buffered']
    #allocation7 [shape = 'u8[589824]{0}', space=vmem, size = 0x90000, scoped, tag = 'input window, operand 5, single buffered']
    #allocation8 [shape = 's32[1]{0}', space=sflag, size = 0x4, scoped, tag = 'scoped memory for shakes_hyper_forward.1']
    #allocation9 [shape = 'u8[36864]{0}', space=vmem, size = 0x9000, scoped, tag = 'input window, operand 6, single buffered']
    %12 = vsyncpa [#allocation3], 0
    %13 = vsyncpa [#allocation5], 0
    %14 = vsyncpa [#allocation8], 0
    // Predicated region
    $region2: #{shakes_hyper_forward.1} parent=1 // pred_check
      _
    $region3: #{shakes_hyper_forward.1} parent=1 // pred_check_branch
      %16 = sbr.rel (0) target = $region5
    $region4: #{shakes_hyper_forward.1} parent=1 // pred_region
      %s18 = ssub.s32 32, 32
      %19 = vsyncadd [#allocation3], %s18
      %s21 = sshll.u32 [#allocation2], 4
      %s22 = int_to_ptr.vmem [resolvable:$true] %s21
      %24 = dma.hbm_to_vmem [thread:$0]  %s0, 32, %s22, [#allocation3]
    $region5: #{shakes_hyper_forward.1} parent=1 // pred_fallthru
      _
    // Predicated region
    $region6: #{shakes_hyper_forward.1} parent=1 // pred_check
      _
    $region7: #{shakes_hyper_forward.1} parent=1 // pred_check_branch
      %26 = sbr.rel (0) target = $region9
    $region8: #{shakes_hyper_forward.1} parent=1 // pred_region
      %s28 = ssub.s32 512, 512
      %29 = vsyncadd [#allocation5], %s28
      %s30 = sshll.u32 [#allocation4], 4
      %s31 = int_to_ptr.vmem [resolvable:$true] %s30
      %36 = dma.hbm_to_vmem [thread:$0]  %s1, 512, %s31, [#allocation5], 128, 128, 8
    $region9: #{shakes_hyper_forward.1} parent=1 // pred_fallthru
      _
    // Predicated region
    $region10: #{shakes_hyper_forward.1} parent=1 // pred_check
      _
    $region11: #{shakes_hyper_forward.1} parent=1 // pred_check_branch
      %38 = sbr.rel (0) target = $region13
    $region12: #{shakes_hyper_forward.1} parent=1 // pred_region
      _
    $region13: #{shakes_hyper_forward.1} parent=1 // pred_fallthru
      _
    // Predicated region
    $region14: #{shakes_hyper_forward.1} parent=1 // pred_check
      _
    $region15: #{shakes_hyper_forward.1} parent=1 // pred_check_branch
      %40 = sbr.rel (0) target = $region17
    $region16: #{shakes_hyper_forward.1} parent=1 // pred_region
      %s42 = ssub.s32 512, 512
      %43 = vsyncadd [#allocation5], %s42
      %s44 = sshll.u32 [#allocation6], 4
      %s45 = int_to_ptr.vmem [resolvable:$true] %s44
      %50 = dma.hbm_to_vmem [thread:$0]  %s3, 512, %s45, [#allocation5], 128, 128, 8
    $region17: #{shakes_hyper_forward.1} parent=1 // pred_fallthru
      _
    // Predicated region
    $region18: #{shakes_hyper_forward.1} parent=1 // pred_check
      _
    $region19: #{shakes_hyper_forward.1} parent=1 // pred_check_branch
      %52 = sbr.rel (0) target = $region21
    $region20: #{shakes_hyper_forward.1} parent=1 // pred_region
      _
    $region21: #{shakes_hyper_forward.1} parent=1 // pred_fallthru
      _
    // Predicated region
    $region22: #{shakes_hyper_forward.1} parent=1 // pred_check
      _
    $region23: #{shakes_hyper_forward.1} parent=1 // pred_check_branch
      %54 = sbr.rel (0) target = $region25
    $region24: #{shakes_hyper_forward.1} parent=1 // pred_region
      %s56 = ssub.s32 18432, 18432
      %57 = vsyncadd [#allocation8], %s56
      %s58 = sshll.u32 [#allocation7], 4
      %s59 = int_to_ptr.vmem [resolvable:$true] %s58
      %64 = dma.hbm_to_vmem [thread:$0]  %s5, 18432, %s59, [#allocation8], 4608, 4608, 288
    $region25: #{shakes_hyper_forward.1} parent=1 // pred_fallthru
      _
    // Predicated region
    $region26: #{shakes_hyper_forward.1} parent=1 // pred_check
      _
    $region27: #{shakes_hyper_forward.1} parent=1 // pred_check_branch
      %66 = sbr.rel (0) target = $region29
    $region28: #{shakes_hyper_forward.1} parent=1 // pred_region
      %s68 = ssub.s32 1152, 1152
      %69 = vsyncadd [#allocation8], %s68
      %s71 = sshll.u32 [#allocation9], 4
      %s72 = int_to_ptr.vmem [resolvable:$true] %s71
      %74 = dma.hbm_to_vmem [thread:$0]  %s6, 1152, %s72, [#allocation8]
    $region29: #{shakes_hyper_forward.1} parent=1 // pred_fallthru
      _
    // Predicated region
    $region30: #{shakes_hyper_forward.1} parent=1 // pred_check
      _
    $region31: #{shakes_hyper_forward.1} parent=1 // pred_check_branch
      %76 = sbr.rel (0) target = $region33
    $region32: #{shakes_hyper_forward.1} parent=1 // pred_region
      %77 = dma.done [#allocation3], 32
    $region33: #{shakes_hyper_forward.1} parent=1 // pred_fallthru
      _
    // Predicated region
    $region34: #{shakes_hyper_forward.1} parent=1 // pred_check
      _
    $region35: #{shakes_hyper_forward.1} parent=1 // pred_check_branch
      %79 = sbr.rel (0) target = $region37
    $region36: #{shakes_hyper_forward.1} parent=1 // pred_region
      %80 = dma.done [#allocation5], 512
    $region37: #{shakes_hyper_forward.1} parent=1 // pred_fallthru
      _
    // Predicated region
    $region38: #{shakes_hyper_forward.1} parent=1 // pred_check
      _
    $region39: #{shakes_hyper_forward.1} parent=1 // pred_check_branch
      %82 = sbr.rel (0) target = $region41
    $region40: #{shakes_hyper_forward.1} parent=1 // pred_region
      %83 = dma.done [#allocation5], 512
    $region41: #{shakes_hyper_forward.1} parent=1 // pred_fallthru
      _
    // Predicated region
    $region42: #{shakes_hyper_forward.1} parent=1 // pred_check
      _
    $region43: #{shakes_hyper_forward.1} parent=1 // pred_check_branch
      %85 = sbr.rel (0) target = $region45
    $region44: #{shakes_hyper_forward.1} parent=1 // pred_region
      %86 = dma.done [#allocation8], 18432
    $region45: #{shakes_hyper_forward.1} parent=1 // pred_fallthru
      _
    // Predicated region
    $region46: #{shakes_hyper_forward.1} parent=1 // pred_check
      _
    $region47: #{shakes_hyper_forward.1} parent=1 // pred_check_branch
      %88 = sbr.rel (0) target = $region49
    $region48: #{shakes_hyper_forward.1} parent=1 // pred_region
      %89 = dma.done [#allocation8], 1152
    $region49: #{shakes_hyper_forward.1} parent=1 // pred_fallthru
      _
    %v91 = vld [vmem:[#allocation2] sm:$0x3]
    %v92 = vld [vmem:[#allocation4] sm:$0xff]
    %v93 = vld [vmem:[#allocation4 + $0x8] sm:$0xff]
    %v94 = vld [vmem:[#allocation4 + $0x10] sm:$0xff]
    %v95 = vld [vmem:[#allocation4 + $0x18] sm:$0xff]
    %v96 = vld [vmem:[%s2] sm:$0x1]
    %v98 = vlaneseq
    %v99 = vshrl.u32 %v98, 7
    %v100 = vsub.s32 0, %v99
    %v101 = vrot.slane %v96, %v100
    %vm103 = vcmask 261120
    %v105 = vsel %vm103, %v91, 0
    %107 = vmatprep.subr.mxu0 0.0
    %108 = vmatpush1.msra.mxu0 %v92
    %109 = vmatprep.subr.mxu0 0.0
    %110 = vmatpush1.msra.mxu0 %v93
    %111 = vmatprep.subr.mxu0 0.0
    %112 = vmatpush1.msra.mxu0 %v94
    %113 = vmatprep.subr.mxu0 0.0
    %114 = vmatpush1.msra.mxu0 %v95
    %115 = vmatprep.subr.mxu0 0.0
    %116 = vmatpush1.msra.mxu0 0.0
    %117 = vmatprep.subr.mxu0 0.0
    %118 = vmatpush1.msra.mxu0 0.0
    %119 = vmatprep.subr.mxu0 0.0
    %120 = vmatpush1.msra.mxu0 0.0
    %121 = vmatprep.subr.mxu0 0.0
    %122 = vmatpush1.msra.mxu0 0.0
    %123 = vmatprep.subr.mxu0 0.0
    %124 = vmatpush1.msra.mxu0 0.0
    %125 = vmatprep.subr.mxu0 0.0
    %126 = vmatpush1.msra.mxu0 0.0
    %127 = vmatprep.subr.mxu0 0.0
    %128 = vmatpush1.msra.mxu0 0.0
    %129 = vmatprep.subr.mxu0 0.0
    %130 = vmatpush1.msra.mxu0 0.0
    %131 = vmatprep.subr.mxu0 0.0
    %132 = vmatpush1.msra.mxu0 0.0
    %133 = vmatprep.subr.mxu0 0.0
    %134 = vmatpush1.msra.mxu0 0.0
    %135 = vmatprep.subr.mxu0 0.0
    %136 = vmatpush1.msra.mxu0 0.0
    %137 = vmatprep.subr.mxu0 0.0
    %138 = vmatpush1.msra.mxu0 0.0
    %139 = vmatprep.subr.mxu0 0.0
    %140 = vmatpush1.msra.mxu0 0.0
    %141 = vmatprep.subr.mxu0 0.0
    %142 = vmatpush1.msra.mxu0 0.0
    %143 = vmatprep.subr.mxu0 0.0
    %144 = vmatpush1.msra.mxu0 0.0
    %145 = vmatprep.subr.mxu0 0.0
    %146 = vmatpush1.msra.mxu0 0.0
    %147 = vmatprep.subr.mxu0 0.0
    %148 = vmatpush1.msra.mxu0 0.0
    %149 = vmatprep.subr.mxu0 0.0
    %150 = vmatpush1.msra.mxu0 0.0
    %151 = vmatprep.subr.mxu0 0.0
    %152 = vmatpush1.msra.mxu0 0.0
    %153 = vmatprep.subr.mxu0 0.0
    %154 = vmatpush1.msra.mxu0 0.0
    %155 = vmatprep.subr.mxu0 0.0
    %156 = vmatpush1.msra.mxu0 0.0
    %157 = vmatprep.subr.mxu0 0.0
    %158 = vmatpush1.msra.mxu0 0.0
    %159 = vmatprep.subr.mxu0 0.0
    %160 = vmatpush1.msra.mxu0 0.0
    %161 = vmatprep.subr.mxu0 0.0
    %162 = vmatpush1.msra.mxu0 0.0
    %163 = vmatprep.subr.mxu0 0.0
    %164 = vmatpush1.msra.mxu0 0.0
    %165 = vmatprep.subr.mxu0 0.0
    %166 = vmatpush1.msra.mxu0 0.0
    %167 = vmatprep.subr.mxu0 0.0
    %168 = vmatpush1.msra.mxu0 0.0
    %169 = vmatprep.subr.mxu0 0.0
    %170 = vmatpush1.msra.mxu0 0.0
    %171 = vmatprep.mubr.f32.mxu0 0.0
    %172 = vmatmul.mubr.f32.gmra.mrb[0].mxu0 %v105
    %v173 = vpop.f32.mrb[0].mxu0
    %v174 = vadd.f32 %v101, %v173
    %v175 = vpop.f32.mrb[0].mxu0
    %176 = vdwg.mxu0
    %v177 = vmax.f32 %v174, 0.0
    %v178 = vld [vmem:[#allocation6] sm:$0xff]
    %v179 = vld [vmem:[#allocation6 + $0x8] sm:$0xff]
    %v180 = vld [vmem:[#allocation6 + $0x10] sm:$0xff]
    %v181 = vld [vmem:[#allocation6 + $0x18] sm:$0xff]
    %v182 = vld [vmem:[%s4] sm:$0x1]
    %v184 = vlaneseq
    %v185 = vshrl.u32 %v184, 7
    %v186 = vsub.s32 0, %v185
    %v187 = vrot.slane %v182, %v186
    %v190 = vsel %vm103, %v177, 0
    %192 = vmatprep.subr.mxu0 0.0
    %193 = vmatpush1.msra.mxu0 %v178
    %194 = vmatprep.subr.mxu0 0.0
    %195 = vmatpush1.msra.mxu0 %v179
    %196 = vmatprep.subr.mxu0 0.0
    %197 = vmatpush1.msra.mxu0 %v180
    %198 = vmatprep.subr.mxu0 0.0
    %199 = vmatpush1.msra.mxu0 %v181
    %200 = vmatprep.subr.mxu0 0.0
    %201 = vmatpush1.msra.mxu0 0.0
    %202 = vmatprep.subr.mxu0 0.0
    %203 = vmatpush1.msra.mxu0 0.0
    %204 = vmatprep.subr.mxu0 0.0
    %205 = vmatpush1.msra.mxu0 0.0
    %206 = vmatprep.subr.mxu0 0.0
    %207 = vmatpush1.msra.mxu0 0.0
    %208 = vmatprep.subr.mxu0 0.0
    %209 = vmatpush1.msra.mxu0 0.0
    %210 = vmatprep.subr.mxu0 0.0
    %211 = vmatpush1.msra.mxu0 0.0
    %212 = vmatprep.subr.mxu0 0.0
    %213 = vmatpush1.msra.mxu0 0.0
    %214 = vmatprep.subr.mxu0 0.0
    %215 = vmatpush1.msra.mxu0 0.0
    %216 = vmatprep.subr.mxu0 0.0
    %217 = vmatpush1.msra.mxu0 0.0
    %218 = vmatprep.subr.mxu0 0.0
    %219 = vmatpush1.msra.mxu0 0.0
    %220 = vmatprep.subr.mxu0 0.0
    %221 = vmatpush1.msra.mxu0 0.0
    %222 = vmatprep.subr.mxu0 0.0
    %223 = vmatpush1.msra.mxu0 0.0
    %224 = vmatprep.subr.mxu0 0.0
    %225 = vmatpush1.msra.mxu0 0.0
    %226 = vmatprep.subr.mxu0 0.0
    %227 = vmatpush1.msra.mxu0 0.0
    %228 = vmatprep.subr.mxu0 0.0
    %229 = vmatpush1.msra.mxu0 0.0
    %230 = vmatprep.subr.mxu0 0.0
    %231 = vmatpush1.msra.mxu0 0.0
    %232 = vmatprep.subr.mxu0 0.0
    %233 = vmatpush1.msra.mxu0 0.0
    %234 = vmatprep.subr.mxu0 0.0
    %235 = vmatpush1.msra.mxu0 0.0
    %236 = vmatprep.subr.mxu0 0.0
    %237 = vmatpush1.msra.mxu0 0.0
    %238 = vmatprep.subr.mxu0 0.0
    %239 = vmatpush1.msra.mxu0 0.0
    %240 = vmatprep.subr.mxu0 0.0
    %241 = vmatpush1.msra.mxu0 0.0
    %242 = vmatprep.subr.mxu0 0.0
    %243 = vmatpush1.msra.mxu0 0.0
    %244 = vmatprep.subr.mxu0 0.0
    %245 = vmatpush1.msra.mxu0 0.0
    %246 = vmatprep.subr.mxu0 0.0
    %247 = vmatpush1.msra.mxu0 0.0
    %248 = vmatprep.subr.mxu0 0.0
    %249 = vmatpush1.msra.mxu0 0.0
    %250 = vmatprep.subr.mxu0 0.0
    %251 = vmatpush1.msra.mxu0 0.0
    %252 = vmatprep.subr.mxu0 0.0
    %253 = vmatpush1.msra.mxu0 0.0
    %254 = vmatprep.subr.mxu0 0.0
    %255 = vmatpush1.msra.mxu0 0.0
    %256 = vmatprep.mubr.f32.mxu0 0.0
    %257 = vmatmul.mubr.f32.gmra.mrb[0].mxu0 %v190
    %v258 = vpop.f32.mrb[0].mxu0
    %v259 = vadd.f32 %v187, %v258
    %v260 = vpop.f32.mrb[0].mxu0
    %261 = vdwg.mxu0
    %v262 = vpack.c.bf16 %v259, %v259
    %v263 = vld [vmem:[#allocation7] sm:$0xff]
    %v264 = vld [vmem:[#allocation7 + $0x8] sm:$0xff]
    %v265 = vld [vmem:[#allocation7 + $0x10] sm:$0xff]
    %v266 = vld [vmem:[#allocation7 + $0x18] sm:$0xff]
    %v267 = vld [vmem:[#allocation7 + $0x20] sm:$0xff]
    %v268 = vld [vmem:[#allocation7 + $0x28] sm:$0xff]
    %v269 = vld [vmem:[#allocation7 + $0x30] sm:$0xff]
    %v270 = vld [vmem:[#allocation7 + $0x38] sm:$0xff]
    %v271 = vld [vmem:[#allocation7 + $0x40] sm:$0xff]
    %v272 = vld [vmem:[#allocation7 + $0x48] sm:$0xff]
    %v273 = vld [vmem:[#allocation7 + $0x50] sm:$0xff]
    %v274 = vld [vmem:[#allocation7 + $0x58] sm:$0xff]
    %v275 = vld [vmem:[#allocation7 + $0x60] sm:$0xff]
    %v276 = vld [vmem:[#allocation7 + $0x68] sm:$0xff]
    %v277 = vld [vmem:[#allocation7 + $0x70] sm:$0xff]
    %v278 = vld [vmem:[#allocation7 + $0x78] sm:$0xff]
    %v279 = vld [vmem:[#allocation7 + $0x80] sm:$0xff]
    %v280 = vld [vmem:[#allocation7 + $0x88] sm:$0xff]
    %v281 = vld [vmem:[#allocation7 + $0x90] sm:$0xff]
    %v282 = vld [vmem:[#allocation7 + $0x98] sm:$0xff]
    %v283 = vld [vmem:[#allocation7 + $0xa0] sm:$0xff]
    %v284 = vld [vmem:[#allocation7 + $0xa8] sm:$0xff]
    %v285 = vld [vmem:[#allocation7 + $0xb0] sm:$0xff]
    %v286 = vld [vmem:[#allocation7 + $0xb8] sm:$0xff]
    %v287 = vld [vmem:[#allocation7 + $0xc0] sm:$0xff]
    %v288 = vld [vmem:[#allocation7 + $0xc8] sm:$0xff]
    %v289 = vld [vmem:[#allocation7 + $0xd0] sm:$0xff]
    %v290 = vld [vmem:[#allocation7 + $0xd8] sm:$0xff]
    %v291 = vld [vmem:[#allocation7 + $0xe0] sm:$0xff]
    %v292 = vld [vmem:[#allocation7 + $0xe8] sm:$0xff]
    %v293 = vld [vmem:[#allocation7 + $0xf0] sm:$0xff]
    %v294 = vld [vmem:[#allocation7 + $0xf8] sm:$0xff]
    %v295 = vld [vmem:[#allocation7 + $0x100] sm:$0xff]
    %v296 = vld [vmem:[#allocation7 + $0x108] sm:$0xff]
    %v297 = vld [vmem:[#allocation7 + $0x110] sm:$0xff]
    %v298 = vld [vmem:[#allocation7 + $0x118] sm:$0xff]
    %v299 = vld [vmem:[#allocation7 + $0x120] sm:$0xff]
    %v300 = vld [vmem:[#allocation7 + $0x128] sm:$0xff]
    %v301 = vld [vmem:[#allocation7 + $0x130] sm:$0xff]
    %v302 = vld [vmem:[#allocation7 + $0x138] sm:$0xff]
    %v303 = vld [vmem:[#allocation7 + $0x140] sm:$0xff]
    %v304 = vld [vmem:[#allocation7 + $0x148] sm:$0xff]
    %v305 = vld [vmem:[#allocation7 + $0x150] sm:$0xff]
    %v306 = vld [vmem:[#allocation7 + $0x158] sm:$0xff]
    %v307 = vld [vmem:[#allocation7 + $0x160] sm:$0xff]
    %v308 = vld [vmem:[#allocation7 + $0x168] sm:$0xff]
    %v309 = vld [vmem:[#allocation7 + $0x170] sm:$0xff]
    %v310 = vld [vmem:[#allocation7 + $0x178] sm:$0xff]
    %v311 = vld [vmem:[#allocation7 + $0x180] sm:$0xff]
    %v312 = vld [vmem:[#allocation7 + $0x188] sm:$0xff]
    %v313 = vld [vmem:[#allocation7 + $0x190] sm:$0xff]
    %v314 = vld [vmem:[#allocation7 + $0x198] sm:$0xff]
    %v315 = vld [vmem:[#allocation7 + $0x1a0] sm:$0xff]
    %v316 = vld [vmem:[#allocation7 + $0x1a8] sm:$0xff]
    %v317 = vld [vmem:[#allocation7 + $0x1b0] sm:$0xff]
    %v318 = vld [vmem:[#allocation7 + $0x1b8] sm:$0xff]
    %v319 = vld [vmem:[#allocation7 + $0x1c0] sm:$0xff]
    %v320 = vld [vmem:[#allocation7 + $0x1c8] sm:$0xff]
    %v321 = vld [vmem:[#allocation7 + $0x1d0] sm:$0xff]
    %v322 = vld [vmem:[#allocation7 + $0x1d8] sm:$0xff]
    %v323 = vld [vmem:[#allocation7 + $0x1e0] sm:$0xff]
    %v324 = vld [vmem:[#allocation7 + $0x1e8] sm:$0xff]
    %v325 = vld [vmem:[#allocation7 + $0x1f0] sm:$0xff]
    %v326 = vld [vmem:[#allocation7 + $0x1f8] sm:$0xff]
    %v327 = vld [vmem:[#allocation7 + $0x200] sm:$0xff]
    %v328 = vld [vmem:[#allocation7 + $0x208] sm:$0xff]
    %v329 = vld [vmem:[#allocation7 + $0x210] sm:$0xff]
    %v330 = vld [vmem:[#allocation7 + $0x218] sm:$0xff]
    %v331 = vld [vmem:[#allocation7 + $0x220] sm:$0xff]
    %v332 = vld [vmem:[#allocation7 + $0x228] sm:$0xff]
    %v333 = vld [vmem:[#allocation7 + $0x230] sm:$0xff]
    %v334 = vld [vmem:[#allocation7 + $0x238] sm:$0xff]
    %v335 = vld [vmem:[#allocation7 + $0x240] sm:$0xff]
    %v336 = vld [vmem:[#allocation7 + $0x248] sm:$0xff]
    %v337 = vld [vmem:[#allocation7 + $0x250] sm:$0xff]
    %v338 = vld [vmem:[#allocation7 + $0x258] sm:$0xff]
    %v339 = vld [vmem:[#allocation7 + $0x260] sm:$0xff]
    %v340 = vld [vmem:[#allocation7 + $0x268] sm:$0xff]
    %v341 = vld [vmem:[#allocation7 + $0x270] sm:$0xff]
    %v342 = vld [vmem:[#allocation7 + $0x278] sm:$0xff]
    %v343 = vld [vmem:[#allocation7 + $0x280] sm:$0xff]
    %v344 = vld [vmem:[#allocation7 + $0x288] sm:$0xff]
    %v345 = vld [vmem:[#allocation7 + $0x290] sm:$0xff]
    %v346 = vld [vmem:[#allocation7 + $0x298] sm:$0xff]
    %v347 = vld [vmem:[#allocation7 + $0x2a0] sm:$0xff]
    %v348 = vld [vmem:[#allocation7 + $0x2a8] sm:$0xff]
    %v349 = vld [vmem:[#allocation7 + $0x2b0] sm:$0xff]
    %v350 = vld [vmem:[#allocation7 + $0x2b8] sm:$0xff]
    %v351 = vld [vmem:[#allocation7 + $0x2c0] sm:$0xff]
    %v352 = vld [vmem:[#allocation7 + $0x2c8] sm:$0xff]
    %v353 = vld [vmem:[#allocation7 + $0x2d0] sm:$0xff]
    %v354 = vld [vmem:[#allocation7 + $0x2d8] sm:$0xff]
    %v355 = vld [vmem:[#allocation7 + $0x2e0] sm:$0xff]
    %v356 = vld [vmem:[#allocation7 + $0x2e8] sm:$0xff]
    %v357 = vld [vmem:[#allocation7 + $0x2f0] sm:$0xff]
    %v358 = vld [vmem:[#allocation7 + $0x2f8] sm:$0xff]
    %v359 = vld [vmem:[#allocation7 + $0x300] sm:$0xff]
    %v360 = vld [vmem:[#allocation7 + $0x308] sm:$0xff]
    %v361 = vld [vmem:[#allocation7 + $0x310] sm:$0xff]
    %v362 = vld [vmem:[#allocation7 + $0x318] sm:$0xff]
    %v363 = vld [vmem:[#allocation7 + $0x320] sm:$0xff]
    %v364 = vld [vmem:[#allocation7 + $0x328] sm:$0xff]
    %v365 = vld [vmem:[#allocation7 + $0x330] sm:$0xff]
    %v366 = vld [vmem:[#allocation7 + $0x338] sm:$0xff]
    %v367 = vld [vmem:[#allocation7 + $0x340] sm:$0xff]
    %v368 = vld [vmem:[#allocation7 + $0x348] sm:$0xff]
    %v369 = vld [vmem:[#allocation7 + $0x350] sm:$0xff]
    %v370 = vld [vmem:[#allocation7 + $0x358] sm:$0xff]
    %v371 = vld [vmem:[#allocation7 + $0x360] sm:$0xff]
    %v372 = vld [vmem:[#allocation7 + $0x368] sm:$0xff]
    %v373 = vld [vmem:[#allocation7 + $0x370] sm:$0xff]
    %v374 = vld [vmem:[#allocation7 + $0x378] sm:$0xff]
    %v375 = vld [vmem:[#allocation7 + $0x380] sm:$0xff]
    %v376 = vld [vmem:[#allocation7 + $0x388] sm:$0xff]
    %v377 = vld [vmem:[#allocation7 + $0x390] sm:$0xff]
    %v378 = vld [vmem:[#allocation7 + $0x398] sm:$0xff]
    %v379 = vld [vmem:[#allocation7 + $0x3a0] sm:$0xff]
    %v380 = vld [vmem:[#allocation7 + $0x3a8] sm:$0xff]
    %v381 = vld [vmem:[#allocation7 + $0x3b0] sm:$0xff]
    %v382 = vld [vmem:[#allocation7 + $0x3b8] sm:$0xff]
    %v383 = vld [vmem:[#allocation7 + $0x3c0] sm:$0xff]
    %v384 = vld [vmem:[#allocation7 + $0x3c8] sm:$0xff]
    %v385 = vld [vmem:[#allocation7 + $0x3d0] sm:$0xff]
    %v386 = vld [vmem:[#allocation7 + $0x3d8] sm:$0xff]
    %v387 = vld [vmem:[#allocation7 + $0x3e0] sm:$0xff]
    %v388 = vld [vmem:[#allocation7 + $0x3e8] sm:$0xff]
    %v389 = vld [vmem:[#allocation7 + $0x3f0] sm:$0xff]
    %v390 = vld [vmem:[#allocation7 + $0x3f8] sm:$0xff]
    %v391 = vld [vmem:[#allocation7 + $0x400] sm:$0xff]
    %v392 = vld [vmem:[#allocation7 + $0x408] sm:$0xff]
    %v393 = vld [vmem:[#allocation7 + $0x410] sm:$0xff]
    %v394 = vld [vmem:[#allocation7 + $0x418] sm:$0xff]
    %v395 = vld [vmem:[#allocation7 + $0x420] sm:$0xff]
    %v396 = vld [vmem:[#allocation7 + $0x428] sm:$0xff]
    %v397 = vld [vmem:[#allocation7 + $0x430] sm:$0xff]
    %v398 = vld [vmem:[#allocation7 + $0x438] sm:$0xff]
    %v399 = vld [vmem:[#allocation7 + $0x440] sm:$0xff]
    %v400 = vld [vmem:[#allocation7 + $0x448] sm:$0xff]
    %v401 = vld [vmem:[#allocation7 + $0x450] sm:$0xff]
    %v402 = vld [vmem:[#allocation7 + $0x458] sm:$0xff]
    %v403 = vld [vmem:[#allocation7 + $0x460] sm:$0xff]
    %v404 = vld [vmem:[#allocation7 + $0x468] sm:$0xff]
    %v405 = vld [vmem:[#allocation7 + $0x470] sm:$0xff]
    %v406 = vld [vmem:[#allocation7 + $0x478] sm:$0xff]
    %v407 = vld [vmem:[#allocation9] sm:$0xff]
    %v408 = vld [vmem:[#allocation9 + $0x8] sm:$0xff]
    %v409 = vld [vmem:[#allocation9 + $0x10] sm:$0xff]
    %v410 = vld [vmem:[#allocation9 + $0x18] sm:$0xff]
    %v411 = vld [vmem:[#allocation9 + $0x20] sm:$0xff]
    %v412 = vld [vmem:[#allocation9 + $0x28] sm:$0xff]
    %v413 = vld [vmem:[#allocation9 + $0x30] sm:$0xff]
    %v414 = vld [vmem:[#allocation9 + $0x38] sm:$0xff]
    %v415 = vld [vmem:[#allocation9 + $0x40] sm:$0xff]
    %v425 = vlaneseq
    %v426 = vshrl.u32 %v425, 7
    %v427 = vsub.s32 0, %v426
    %v428 = vrot.slane %v407, %v427
    %v429 = vlaneseq
    %v430 = vshrl.u32 %v429, 7
    %v431 = vsub.s32 1, %v430
    %v432 = vrot.slane %v407, %v431
    %v433 = vlaneseq
    %v434 = vshrl.u32 %v433, 7
    %v435 = vsub.s32 2, %v434
    %v436 = vrot.slane %v407, %v435
    %v437 = vlaneseq
    %v438 = vshrl.u32 %v437, 7
    %v439 = vsub.s32 3, %v438
    %v440 = vrot.slane %v407, %v439
    %v441 = vlaneseq
    %v442 = vshrl.u32 %v441, 7
    %v443 = vsub.s32 4, %v442
    %v444 = vrot.slane %v407, %v443
    %v445 = vlaneseq
    %v446 = vshrl.u32 %v445, 7
    %v447 = vsub.s32 5, %v446
    %v448 = vrot.slane %v407, %v447
    %v449 = vlaneseq
    %v450 = vshrl.u32 %v449, 7
    %v451 = vsub.s32 6, %v450
    %v452 = vrot.slane %v407, %v451
    %v453 = vlaneseq
    %v454 = vshrl.u32 %v453, 7
    %v455 = vsub.s32 7, %v454
    %v456 = vrot.slane %v407, %v455
    %v457 = vlaneseq
    %v458 = vshrl.u32 %v457, 7
    %v459 = vsub.s32 0, %v458
    %v460 = vrot.slane %v408, %v459
    %v461 = vlaneseq
    %v462 = vshrl.u32 %v461, 7
    %v463 = vsub.s32 1, %v462
    %v464 = vrot.slane %v408, %v463
    %v465 = vlaneseq
    %v466 = vshrl.u32 %v465, 7
    %v467 = vsub.s32 2, %v466
    %v468 = vrot.slane %v408, %v467
    %v469 = vlaneseq
    %v470 = vshrl.u32 %v469, 7
    %v471 = vsub.s32 3, %v470
    %v472 = vrot.slane %v408, %v471
    %v473 = vlaneseq
    %v474 = vshrl.u32 %v473, 7
    %v475 = vsub.s32 4, %v474
    %v476 = vrot.slane %v408, %v475
    %v477 = vlaneseq
    %v478 = vshrl.u32 %v477, 7
    %v479 = vsub.s32 5, %v478
    %v480 = vrot.slane %v408, %v479
    %v481 = vlaneseq
    %v482 = vshrl.u32 %v481, 7
    %v483 = vsub.s32 6, %v482
    %v484 = vrot.slane %v408, %v483
    %v485 = vlaneseq
    %v486 = vshrl.u32 %v485, 7
    %v487 = vsub.s32 7, %v486
    %v488 = vrot.slane %v408, %v487
    %v489 = vlaneseq
    %v490 = vshrl.u32 %v489, 7
    %v491 = vsub.s32 0, %v490
    %v492 = vrot.slane %v409, %v491
    %v493 = vlaneseq
    %v494 = vshrl.u32 %v493, 7
    %v495 = vsub.s32 1, %v494
    %v496 = vrot.slane %v409, %v495
    %v497 = vlaneseq
    %v498 = vshrl.u32 %v497, 7
    %v499 = vsub.s32 2, %v498
    %v500 = vrot.slane %v409, %v499
    %v501 = vlaneseq
    %v502 = vshrl.u32 %v501, 7
    %v503 = vsub.s32 3, %v502
    %v504 = vrot.slane %v409, %v503
    %v505 = vlaneseq
    %v506 = vshrl.u32 %v505, 7
    %v507 = vsub.s32 4, %v506
    %v508 = vrot.slane %v409, %v507
    %v509 = vlaneseq
    %v510 = vshrl.u32 %v509, 7
    %v511 = vsub.s32 5, %v510
    %v512 = vrot.slane %v409, %v511
    %v513 = vlaneseq
    %v514 = vshrl.u32 %v513, 7
    %v515 = vsub.s32 6, %v514
    %v516 = vrot.slane %v409, %v515
    %v517 = vlaneseq
    %v518 = vshrl.u32 %v517, 7
    %v519 = vsub.s32 7, %v518
    %v520 = vrot.slane %v409, %v519
    %v521 = vlaneseq
    %v522 = vshrl.u32 %v521, 7
    %v523 = vsub.s32 0, %v522
    %v524 = vrot.slane %v410, %v523
    %v525 = vlaneseq
    %v526 = vshrl.u32 %v525, 7
    %v527 = vsub.s32 1, %v526
    %v528 = vrot.slane %v410, %v527
    %v529 = vlaneseq
    %v530 = vshrl.u32 %v529, 7
    %v531 = vsub.s32 2, %v530
    %v532 = vrot.slane %v410, %v531
    %v533 = vlaneseq
    %v534 = vshrl.u32 %v533, 7
    %v535 = vsub.s32 3, %v534
    %v536 = vrot.slane %v410, %v535
    %v537 = vlaneseq
    %v538 = vshrl.u32 %v537, 7
    %v539 = vsub.s32 4, %v538
    %v540 = vrot.slane %v410, %v539
    %v541 = vlaneseq
    %v542 = vshrl.u32 %v541, 7
    %v543 = vsub.s32 5, %v542
    %v544 = vrot.slane %v410, %v543
    %v545 = vlaneseq
    %v546 = vshrl.u32 %v545, 7
    %v547 = vsub.s32 6, %v546
    %v548 = vrot.slane %v410, %v547
    %v549 = vlaneseq
    %v550 = vshrl.u32 %v549, 7
    %v551 = vsub.s32 7, %v550
    %v552 = vrot.slane %v410, %v551
    %v553 = vlaneseq
    %v554 = vshrl.u32 %v553, 7
    %v555 = vsub.s32 0, %v554
    %v556 = vrot.slane %v411, %v555
    %v557 = vlaneseq
    %v558 = vshrl.u32 %v557, 7
    %v559 = vsub.s32 1, %v558
    %v560 = vrot.slane %v411, %v559
    %v561 = vlaneseq
    %v562 = vshrl.u32 %v561, 7
    %v563 = vsub.s32 2, %v562
    %v564 = vrot.slane %v411, %v563
    %v565 = vlaneseq
    %v566 = vshrl.u32 %v565, 7
    %v567 = vsub.s32 3, %v566
    %v568 = vrot.slane %v411, %v567
    %v569 = vlaneseq
    %v570 = vshrl.u32 %v569, 7
    %v571 = vsub.s32 4, %v570
    %v572 = vrot.slane %v411, %v571
    %v573 = vlaneseq
    %v574 = vshrl.u32 %v573, 7
    %v575 = vsub.s32 5, %v574
    %v576 = vrot.slane %v411, %v575
    %v577 = vlaneseq
    %v578 = vshrl.u32 %v577, 7
    %v579 = vsub.s32 6, %v578
    %v580 = vrot.slane %v411, %v579
    %v581 = vlaneseq
    %v582 = vshrl.u32 %v581, 7
    %v583 = vsub.s32 7, %v582
    %v584 = vrot.slane %v411, %v583
    %v585 = vlaneseq
    %v586 = vshrl.u32 %v585, 7
    %v587 = vsub.s32 0, %v586
    %v588 = vrot.slane %v412, %v587
    %v589 = vlaneseq
    %v590 = vshrl.u32 %v589, 7
    %v591 = vsub.s32 1, %v590
    %v592 = vrot.slane %v412, %v591
    %v593 = vlaneseq
    %v594 = vshrl.u32 %v593, 7
    %v595 = vsub.s32 2, %v594
    %v596 = vrot.slane %v412, %v595
    %v597 = vlaneseq
    %v598 = vshrl.u32 %v597, 7
    %v599 = vsub.s32 3, %v598
    %v600 = vrot.slane %v412, %v599
    %v601 = vlaneseq
    %v602 = vshrl.u32 %v601, 7
    %v603 = vsub.s32 4, %v602
    %v604 = vrot.slane %v412, %v603
    %v605 = vlaneseq
    %v606 = vshrl.u32 %v605, 7
    %v607 = vsub.s32 5, %v606
    %v608 = vrot.slane %v412, %v607
    %v609 = vlaneseq
    %v610 = vshrl.u32 %v609, 7
    %v611 = vsub.s32 6, %v610
    %v612 = vrot.slane %v412, %v611
    %v613 = vlaneseq
    %v614 = vshrl.u32 %v613, 7
    %v615 = vsub.s32 7, %v614
    %v616 = vrot.slane %v412, %v615
    %v617 = vlaneseq
    %v618 = vshrl.u32 %v617, 7
    %v619 = vsub.s32 0, %v618
    %v620 = vrot.slane %v413, %v619
    %v621 = vlaneseq
    %v622 = vshrl.u32 %v621, 7
    %v623 = vsub.s32 1, %v622
    %v624 = vrot.slane %v413, %v623
    %v625 = vlaneseq
    %v626 = vshrl.u32 %v625, 7
    %v627 = vsub.s32 2, %v626
    %v628 = vrot.slane %v413, %v627
    %v629 = vlaneseq
    %v630 = vshrl.u32 %v629, 7
    %v631 = vsub.s32 3, %v630
    %v632 = vrot.slane %v413, %v631
    %v633 = vlaneseq
    %v634 = vshrl.u32 %v633, 7
    %v635 = vsub.s32 4, %v634
    %v636 = vrot.slane %v413, %v635
    %v637 = vlaneseq
    %v638 = vshrl.u32 %v637, 7
    %v639 = vsub.s32 5, %v638
    %v640 = vrot.slane %v413, %v639
    %v641 = vlaneseq
    %v642 = vshrl.u32 %v641, 7
    %v643 = vsub.s32 6, %v642
    %v644 = vrot.slane %v413, %v643
    %v645 = vlaneseq
    %v646 = vshrl.u32 %v645, 7
    %v647 = vsub.s32 7, %v646
    %v648 = vrot.slane %v413, %v647
    %v649 = vlaneseq
    %v650 = vshrl.u32 %v649, 7
    %v651 = vsub.s32 0, %v650
    %v652 = vrot.slane %v414, %v651
    %v653 = vlaneseq
    %v654 = vshrl.u32 %v653, 7
    %v655 = vsub.s32 1, %v654
    %v656 = vrot.slane %v414, %v655
    %v657 = vlaneseq
    %v658 = vshrl.u32 %v657, 7
    %v659 = vsub.s32 2, %v658
    %v660 = vrot.slane %v414, %v659
    %v661 = vlaneseq
    %v662 = vshrl.u32 %v661, 7
    %v663 = vsub.s32 3, %v662
    %v664 = vrot.slane %v414, %v663
    %v665 = vlaneseq
    %v666 = vshrl.u32 %v665, 7
    %v667 = vsub.s32 4, %v666
    %v668 = vrot.slane %v414, %v667
    %v669 = vlaneseq
    %v670 = vshrl.u32 %v669, 7
    %v671 = vsub.s32 5, %v670
    %v672 = vrot.slane %v414, %v671
    %v673 = vlaneseq
    %v674 = vshrl.u32 %v673, 7
    %v675 = vsub.s32 6, %v674
    %v676 = vrot.slane %v414, %v675
    %v677 = vlaneseq
    %v678 = vshrl.u32 %v677, 7
    %v679 = vsub.s32 7, %v678
    %v680 = vrot.slane %v414, %v679
    %v681 = vlaneseq
    %v682 = vshrl.u32 %v681, 7
    %v683 = vsub.s32 0, %v682
    %v684 = vrot.slane %v415, %v683
    %v685 = vlaneseq
    %v686 = vshrl.u32 %v685, 7
    %v687 = vsub.s32 1, %v686
    %v688 = vrot.slane %v415, %v687
    %v689 = vlaneseq
    %v690 = vshrl.u32 %v689, 7
    %v691 = vsub.s32 2, %v690
    %v692 = vrot.slane %v415, %v691
    %v693 = vlaneseq
    %v694 = vshrl.u32 %v693, 7
    %v695 = vsub.s32 3, %v694
    %v696 = vrot.slane %v415, %v695
    %v697 = vlaneseq
    %v698 = vshrl.u32 %v697, 7
    %v699 = vsub.s32 4, %v698
    %v700 = vrot.slane %v415, %v699
    %v701 = vlaneseq
    %v702 = vshrl.u32 %v701, 7
    %v703 = vsub.s32 5, %v702
    %v704 = vrot.slane %v415, %v703
    %v705 = vlaneseq
    %v706 = vshrl.u32 %v705, 7
    %v707 = vsub.s32 6, %v706
    %v708 = vrot.slane %v415, %v707
    %v709 = vlaneseq
    %v710 = vshrl.u32 %v709, 7
    %v711 = vsub.s32 7, %v710
    %v712 = vrot.slane %v415, %v711
    %v929 = vunpack.c.l.b16 %v263
    %v930 = vunpack.c.h.b16 %v263
    %v931 = vunpack.c.l.b16 %v264
    %v932 = vunpack.c.h.b16 %v264
    %v933 = vunpack.c.l.b16 %v265
    %v934 = vunpack.c.h.b16 %v265
    %v935 = vunpack.c.l.b16 %v266
    %v936 = vunpack.c.h.b16 %v266
    %v937 = vunpack.c.l.b16 %v267
    %v938 = vunpack.c.h.b16 %v267
    %v939 = vunpack.c.l.b16 %v268
    %v940 = vunpack.c.h.b16 %v268
    %v941 = vunpack.c.l.b16 %v269
    %v942 = vunpack.c.h.b16 %v269
    %v943 = vunpack.c.l.b16 %v270
    %v944 = vunpack.c.h.b16 %v270
    %v945 = vunpack.c.l.b16 %v271
    %v946 = vunpack.c.h.b16 %v271
    %v947 = vunpack.c.l.b16 %v272
    %v948 = vunpack.c.h.b16 %v272
    %v949 = vunpack.c.l.b16 %v273
    %v950 = vunpack.c.h.b16 %v273
    %v951 = vunpack.c.l.b16 %v274
    %v952 = vunpack.c.h.b16 %v274
    %v953 = vunpack.c.l.b16 %v275
    %v954 = vunpack.c.h.b16 %v275
    %v955 = vunpack.c.l.b16 %v276
    %v956 = vunpack.c.h.b16 %v276
    %v957 = vunpack.c.l.b16 %v277
    %v958 = vunpack.c.h.b16 %v277
    %v959 = vunpack.c.l.b16 %v278
    %v960 = vunpack.c.h.b16 %v278
    %v961 = vunpack.c.l.b16 %v279
    %v962 = vunpack.c.h.b16 %v279
    %v963 = vunpack.c.l.b16 %v280
    %v964 = vunpack.c.h.b16 %v280
    %v965 = vunpack.c.l.b16 %v281
    %v966 = vunpack.c.h.b16 %v281
    %v967 = vunpack.c.l.b16 %v282
    %v968 = vunpack.c.h.b16 %v282
    %v969 = vunpack.c.l.b16 %v283
    %v970 = vunpack.c.h.b16 %v283
    %v971 = vunpack.c.l.b16 %v284
    %v972 = vunpack.c.h.b16 %v284
    %v973 = vunpack.c.l.b16 %v285
    %v974 = vunpack.c.h.b16 %v285
    %v975 = vunpack.c.l.b16 %v286
    %v976 = vunpack.c.h.b16 %v286
    %v977 = vunpack.c.l.b16 %v287
    %v978 = vunpack.c.h.b16 %v287
    %v979 = vunpack.c.l.b16 %v288
    %v980 = vunpack.c.h.b16 %v288
    %v981 = vunpack.c.l.b16 %v289
    %v982 = vunpack.c.h.b16 %v289
    %v983 = vunpack.c.l.b16 %v290
    %v984 = vunpack.c.h.b16 %v290
    %v985 = vunpack.c.l.b16 %v291
    %v986 = vunpack.c.h.b16 %v291
    %v987 = vunpack.c.l.b16 %v292
    %v988 = vunpack.c.h.b16 %v292
    %v989 = vunpack.c.l.b16 %v293
    %v990 = vunpack.c.h.b16 %v293
    %v991 = vunpack.c.l.b16 %v294
    %v992 = vunpack.c.h.b16 %v294
    %v993 = vunpack.c.l.b16 %v295
    %v994 = vunpack.c.h.b16 %v295
    %v995 = vunpack.c.l.b16 %v296
    %v996 = vunpack.c.h.b16 %v296
    %v997 = vunpack.c.l.b16 %v297
    %v998 = vunpack.c.h.b16 %v297
    %v999 = vunpack.c.l.b16 %v298
    %v1000 = vunpack.c.h.b16 %v298
    %v1001 = vunpack.c.l.b16 %v299
    %v1002 = vunpack.c.h.b16 %v299
    %v1003 = vunpack.c.l.b16 %v300
    %v1004 = vunpack.c.h.b16 %v300
    %v1005 = vunpack.c.l.b16 %v301
    %v1006 = vunpack.c.h.b16 %v301
    %v1007 = vunpack.c.l.b16 %v302
    %v1008 = vunpack.c.h.b16 %v302
    %v1009 = vunpack.c.l.b16 %v303
    %v1010 = vunpack.c.h.b16 %v303
    %v1011 = vunpack.c.l.b16 %v304
    %v1012 = vunpack.c.h.b16 %v304
    %v1013 = vunpack.c.l.b16 %v305
    %v1014 = vunpack.c.h.b16 %v305
    %v1015 = vunpack.c.l.b16 %v306
    %v1016 = vunpack.c.h.b16 %v306
    %v1017 = vunpack.c.l.b16 %v307
    %v1018 = vunpack.c.h.b16 %v307
    %v1019 = vunpack.c.l.b16 %v308
    %v1020 = vunpack.c.h.b16 %v308
    %v1021 = vunpack.c.l.b16 %v309
    %v1022 = vunpack.c.h.b16 %v309
    %v1023 = vunpack.c.l.b16 %v310
    %v1024 = vunpack.c.h.b16 %v310
    %v1025 = vunpack.c.l.b16 %v311
    %v1026 = vunpack.c.h.b16 %v311
    %v1027 = vunpack.c.l.b16 %v312
    %v1028 = vunpack.c.h.b16 %v312
    %v1029 = vunpack.c.l.b16 %v313
    %v1030 = vunpack.c.h.b16 %v313
    %v1031 = vunpack.c.l.b16 %v314
    %v1032 = vunpack.c.h.b16 %v314
    %v1033 = vunpack.c.l.b16 %v315
    %v1034 = vunpack.c.h.b16 %v315
    %v1035 = vunpack.c.l.b16 %v316
    %v1036 = vunpack.c.h.b16 %v316
    %v1037 = vunpack.c.l.b16 %v317
    %v1038 = vunpack.c.h.b16 %v317
    %v1039 = vunpack.c.l.b16 %v318
    %v1040 = vunpack.c.h.b16 %v318
    %v1041 = vunpack.c.l.b16 %v319
    %v1042 = vunpack.c.h.b16 %v319
    %v1043 = vunpack.c.l.b16 %v320
    %v1044 = vunpack.c.h.b16 %v320
    %v1045 = vunpack.c.l.b16 %v321
    %v1046 = vunpack.c.h.b16 %v321
    %v1047 = vunpack.c.l.b16 %v322
    %v1048 = vunpack.c.h.b16 %v322
    %v1049 = vunpack.c.l.b16 %v323
    %v1050 = vunpack.c.h.b16 %v323
    %v1051 = vunpack.c.l.b16 %v324
    %v1052 = vunpack.c.h.b16 %v324
    %v1053 = vunpack.c.l.b16 %v325
    %v1054 = vunpack.c.h.b16 %v325
    %v1055 = vunpack.c.l.b16 %v326
    %v1056 = vunpack.c.h.b16 %v326
    %v1057 = vunpack.c.l.b16 %v327
    %v1058 = vunpack.c.h.b16 %v327
    %v1059 = vunpack.c.l.b16 %v328
    %v1060 = vunpack.c.h.b16 %v328
    %v1061 = vunpack.c.l.b16 %v329
    %v1062 = vunpack.c.h.b16 %v329
    %v1063 = vunpack.c.l.b16 %v330
    %v1064 = vunpack.c.h.b16 %v330
    %v1065 = vunpack.c.l.b16 %v331
    %v1066 = vunpack.c.h.b16 %v331
    %v1067 = vunpack.c.l.b16 %v332
    %v1068 = vunpack.c.h.b16 %v332
    %v1069 = vunpack.c.l.b16 %v333
    %v1070 = vunpack.c.h.b16 %v333
    %v1071 = vunpack.c.l.b16 %v334
    %v1072 = vunpack.c.h.b16 %v334
    %v1073 = vunpack.c.l.b16 %v335
    %v1074 = vunpack.c.h.b16 %v335
    %v1075 = vunpack.c.l.b16 %v336
    %v1076 = vunpack.c.h.b16 %v336
    %v1077 = vunpack.c.l.b16 %v337
    %v1078 = vunpack.c.h.b16 %v337
    %v1079 = vunpack.c.l.b16 %v338
    %v1080 = vunpack.c.h.b16 %v338
    %v1081 = vunpack.c.l.b16 %v339
    %v1082 = vunpack.c.h.b16 %v339
    %v1083 = vunpack.c.l.b16 %v340
    %v1084 = vunpack.c.h.b16 %v340
    %v1085 = vunpack.c.l.b16 %v341
    %v1086 = vunpack.c.h.b16 %v341
    %v1087 = vunpack.c.l.b16 %v342
    %v1088 = vunpack.c.h.b16 %v342
    %v1089 = vunpack.c.l.b16 %v343
    %v1090 = vunpack.c.h.b16 %v343
    %v1091 = vunpack.c.l.b16 %v344
    %v1092 = vunpack.c.h.b16 %v344
    %v1093 = vunpack.c.l.b16 %v345
    %v1094 = vunpack.c.h.b16 %v345
    %v1095 = vunpack.c.l.b16 %v346
    %v1096 = vunpack.c.h.b16 %v346
    %v1097 = vunpack.c.l.b16 %v347
    %v1098 = vunpack.c.h.b16 %v347
    %v1099 = vunpack.c.l.b16 %v348
    %v1100 = vunpack.c.h.b16 %v348
    %v1101 = vunpack.c.l.b16 %v349
    %v1102 = vunpack.c.h.b16 %v349
    %v1103 = vunpack.c.l.b16 %v350
    %v1104 = vunpack.c.h.b16 %v350
    %v1105 = vunpack.c.l.b16 %v351
    %v1106 = vunpack.c.h.b16 %v351
    %v1107 = vunpack.c.l.b16 %v352
    %v1108 = vunpack.c.h.b16 %v352
    %v1109 = vunpack.c.l.b16 %v353
    %v1110 = vunpack.c.h.b16 %v353
    %v1111 = vunpack.c.l.b16 %v354
    %v1112 = vunpack.c.h.b16 %v354
    %v1113 = vunpack.c.l.b16 %v355
    %v1114 = vunpack.c.h.b16 %v355
    %v1115 = vunpack.c.l.b16 %v356
    %v1116 = vunpack.c.h.b16 %v356
    %v1117 = vunpack.c.l.b16 %v357
    %v1118 = vunpack.c.h.b16 %v357
    %v1119 = vunpack.c.l.b16 %v358
    %v1120 = vunpack.c.h.b16 %v358
    %v1121 = vunpack.c.l.b16 %v359
    %v1122 = vunpack.c.h.b16 %v359
    %v1123 = vunpack.c.l.b16 %v360
    %v1124 = vunpack.c.h.b16 %v360
    %v1125 = vunpack.c.l.b16 %v361
    %v1126 = vunpack.c.h.b16 %v361
    %v1127 = vunpack.c.l.b16 %v362
    %v1128 = vunpack.c.h.b16 %v362
    %v1129 = vunpack.c.l.b16 %v363
    %v1130 = vunpack.c.h.b16 %v363
    %v1131 = vunpack.c.l.b16 %v364
    %v1132 = vunpack.c.h.b16 %v364
    %v1133 = vunpack.c.l.b16 %v365
    %v1134 = vunpack.c.h.b16 %v365
    %v1135 = vunpack.c.l.b16 %v366
    %v1136 = vunpack.c.h.b16 %v366
    %v1137 = vunpack.c.l.b16 %v367
    %v1138 = vunpack.c.h.b16 %v367
    %v1139 = vunpack.c.l.b16 %v368
    %v1140 = vunpack.c.h.b16 %v368
    %v1141 = vunpack.c.l.b16 %v369
    %v1142 = vunpack.c.h.b16 %v369
    %v1143 = vunpack.c.l.b16 %v370
    %v1144 = vunpack.c.h.b16 %v370
    %v1145 = vunpack.c.l.b16 %v371
    %v1146 = vunpack.c.h.b16 %v371
    %v1147 = vunpack.c.l.b16 %v372
    %v1148 = vunpack.c.h.b16 %v372
    %v1149 = vunpack.c.l.b16 %v373
    %v1150 = vunpack.c.h.b16 %v373
    %v1151 = vunpack.c.l.b16 %v374
    %v1152 = vunpack.c.h.b16 %v374
    %v1153 = vunpack.c.l.b16 %v375
    %v1154 = vunpack.c.h.b16 %v375
    %v1155 = vunpack.c.l.b16 %v376
    %v1156 = vunpack.c.h.b16 %v376
    %v1157 = vunpack.c.l.b16 %v377
    %v1158 = vunpack.c.h.b16 %v377
    %v1159 = vunpack.c.l.b16 %v378
    %v1160 = vunpack.c.h.b16 %v378
    %v1161 = vunpack.c.l.b16 %v379
    %v1162 = vunpack.c.h.b16 %v379
    %v1163 = vunpack.c.l.b16 %v380
    %v1164 = vunpack.c.h.b16 %v380
    %v1165 = vunpack.c.l.b16 %v381
    %v1166 = vunpack.c.h.b16 %v381
    %v1167 = vunpack.c.l.b16 %v382
    %v1168 = vunpack.c.h.b16 %v382
    %v1169 = vunpack.c.l.b16 %v383
    %v1170 = vunpack.c.h.b16 %v383
    %v1171 = vunpack.c.l.b16 %v384
    %v1172 = vunpack.c.h.b16 %v384
    %v1173 = vunpack.c.l.b16 %v385
    %v1174 = vunpack.c.h.b16 %v385
    %v1175 = vunpack.c.l.b16 %v386
    %v1176 = vunpack.c.h.b16 %v386
    %v1177 = vunpack.c.l.b16 %v387
    %v1178 = vunpack.c.h.b16 %v387
    %v1179 = vunpack.c.l.b16 %v388
    %v1180 = vunpack.c.h.b16 %v388
    %v1181 = vunpack.c.l.b16 %v389
    %v1182 = vunpack.c.h.b16 %v389
    %v1183 = vunpack.c.l.b16 %v390
    %v1184 = vunpack.c.h.b16 %v390
    %v1185 = vunpack.c.l.b16 %v391
    %v1186 = vunpack.c.h.b16 %v391
    %v1187 = vunpack.c.l.b16 %v392
    %v1188 = vunpack.c.h.b16 %v392
    %v1189 = vunpack.c.l.b16 %v393
    %v1190 = vunpack.c.h.b16 %v393
    %v1191 = vunpack.c.l.b16 %v394
    %v1192 = vunpack.c.h.b16 %v394
    %v1193 = vunpack.c.l.b16 %v395
    %v1194 = vunpack.c.h.b16 %v395
    %v1195 = vunpack.c.l.b16 %v396
    %v1196 = vunpack.c.h.b16 %v396
    %v1197 = vunpack.c.l.b16 %v397
    %v1198 = vunpack.c.h.b16 %v397
    %v1199 = vunpack.c.l.b16 %v398
    %v1200 = vunpack.c.h.b16 %v398
    %v1201 = vunpack.c.l.b16 %v399
    %v1202 = vunpack.c.h.b16 %v399
    %v1203 = vunpack.c.l.b16 %v400
    %v1204 = vunpack.c.h.b16 %v400
    %v1205 = vunpack.c.l.b16 %v401
    %v1206 = vunpack.c.h.b16 %v401
    %v1207 = vunpack.c.l.b16 %v402
    %v1208 = vunpack.c.h.b16 %v402
    %v1209 = vunpack.c.l.b16 %v403
    %v1210 = vunpack.c.h.b16 %v403
    %v1211 = vunpack.c.l.b16 %v404
    %v1212 = vunpack.c.h.b16 %v404
    %v1213 = vunpack.c.l.b16 %v405
    %v1214 = vunpack.c.h.b16 %v405
    %v1215 = vunpack.c.l.b16 %v406
    %v1216 = vunpack.c.h.b16 %v406
    %v1217 = vpack.c.b16 %v1001, %v929
    %v1218 = vpack.c.b16 %v1002, %v930
    %v1219 = vpack.c.b16 %v1003, %v931
    %v1220 = vpack.c.b16 %v1004, %v932
    %v1221 = vpack.c.b16 %v1005, %v933
    %v1222 = vpack.c.b16 %v1006, %v934
    %v1223 = vpack.c.b16 %v1007, %v935
    %v1224 = vpack.c.b16 %v1008, %v936
    %v1225 = vpack.c.b16 %v1009, %v937
    %v1226 = vpack.c.b16 %v1010, %v938
    %v1227 = vpack.c.b16 %v1011, %v939
    %v1228 = vpack.c.b16 %v1012, %v940
    %v1229 = vpack.c.b16 %v1013, %v941
    %v1230 = vpack.c.b16 %v1014, %v942
    %v1231 = vpack.c.b16 %v1015, %v943
    %v1232 = vpack.c.b16 %v1016, %v944
    %v1233 = vpack.c.b16 %v1017, %v945
    %v1234 = vpack.c.b16 %v1018, %v946
    %v1235 = vpack.c.b16 %v1019, %v947
    %v1236 = vpack.c.b16 %v1020, %v948
    %v1237 = vpack.c.b16 %v1021, %v949
    %v1238 = vpack.c.b16 %v1022, %v950
    %v1239 = vpack.c.b16 %v1023, %v951
    %v1240 = vpack.c.b16 %v1024, %v952
    %v1241 = vpack.c.b16 %v1025, %v953
    %v1242 = vpack.c.b16 %v1026, %v954
    %v1243 = vpack.c.b16 %v1027, %v955
    %v1244 = vpack.c.b16 %v1028, %v956
    %v1245 = vpack.c.b16 %v1029, %v957
    %v1246 = vpack.c.b16 %v1030, %v958
    %v1247 = vpack.c.b16 %v1031, %v959
    %v1248 = vpack.c.b16 %v1032, %v960
    %v1249 = vpack.c.b16 %v1033, %v961
    %v1250 = vpack.c.b16 %v1034, %v962
    %v1251 = vpack.c.b16 %v1035, %v963
    %v1252 = vpack.c.b16 %v1036, %v964
    %v1253 = vpack.c.b16 %v1037, %v965
    %v1254 = vpack.c.b16 %v1038, %v966
    %v1255 = vpack.c.b16 %v1039, %v967
    %v1256 = vpack.c.b16 %v1040, %v968
    %v1257 = vpack.c.b16 %v1041, %v969
    %v1258 = vpack.c.b16 %v1042, %v970
    %v1259 = vpack.c.b16 %v1043, %v971
    %v1260 = vpack.c.b16 %v1044, %v972
    %v1261 = vpack.c.b16 %v1045, %v973
    %v1262 = vpack.c.b16 %v1046, %v974
    %v1263 = vpack.c.b16 %v1047, %v975
    %v1264 = vpack.c.b16 %v1048, %v976
    %v1265 = vpack.c.b16 %v1049, %v977
    %v1266 = vpack.c.b16 %v1050, %v978
    %v1267 = vpack.c.b16 %v1051, %v979
    %v1268 = vpack.c.b16 %v1052, %v980
    %v1269 = vpack.c.b16 %v1053, %v981
    %v1270 = vpack.c.b16 %v1054, %v982
    %v1271 = vpack.c.b16 %v1055, %v983
    %v1272 = vpack.c.b16 %v1056, %v984
    %v1273 = vpack.c.b16 %v1057, %v985
    %v1274 = vpack.c.b16 %v1058, %v986
    %v1275 = vpack.c.b16 %v1059, %v987
    %v1276 = vpack.c.b16 %v1060, %v988
    %v1277 = vpack.c.b16 %v1061, %v989
    %v1278 = vpack.c.b16 %v1062, %v990
    %v1279 = vpack.c.b16 %v1063, %v991
    %v1280 = vpack.c.b16 %v1064, %v992
    %v1281 = vpack.c.b16 %v1065, %v993
    %v1282 = vpack.c.b16 %v1066, %v994
    %v1283 = vpack.c.b16 %v1067, %v995
    %v1284 = vpack.c.b16 %v1068, %v996
    %v1285 = vpack.c.b16 %v1069, %v997
    %v1286 = vpack.c.b16 %v1070, %v998
    %v1287 = vpack.c.b16 %v1071, %v999
    %v1288 = vpack.c.b16 %v1072, %v1000
    %v1289 = vpack.c.b16 %v1145, %v1073
    %v1290 = vpack.c.b16 %v1146, %v1074
    %v1291 = vpack.c.b16 %v1147, %v1075
    %v1292 = vpack.c.b16 %v1148, %v1076
    %v1293 = vpack.c.b16 %v1149, %v1077
    %v1294 = vpack.c.b16 %v1150, %v1078
    %v1295 = vpack.c.b16 %v1151, %v1079
    %v1296 = vpack.c.b16 %v1152, %v1080
    %v1297 = vpack.c.b16 %v1153, %v1081
    %v1298 = vpack.c.b16 %v1154, %v1082
    %v1299 = vpack.c.b16 %v1155, %v1083
    %v1300 = vpack.c.b16 %v1156, %v1084
    %v1301 = vpack.c.b16 %v1157, %v1085
    %v1302 = vpack.c.b16 %v1158, %v1086
    %v1303 = vpack.c.b16 %v1159, %v1087
    %v1304 = vpack.c.b16 %v1160, %v1088
    %v1305 = vpack.c.b16 %v1161, %v1089
    %v1306 = vpack.c.b16 %v1162, %v1090
    %v1307 = vpack.c.b16 %v1163, %v1091
    %v1308 = vpack.c.b16 %v1164, %v1092
    %v1309 = vpack.c.b16 %v1165, %v1093
    %v1310 = vpack.c.b16 %v1166, %v1094
    %v1311 = vpack.c.b16 %v1167, %v1095
    %v1312 = vpack.c.b16 %v1168, %v1096
    %v1313 = vpack.c.b16 %v1169, %v1097
    %v1314 = vpack.c.b16 %v1170, %v1098
    %v1315 = vpack.c.b16 %v1171, %v1099
    %v1316 = vpack.c.b16 %v1172, %v1100
    %v1317 = vpack.c.b16 %v1173, %v1101
    %v1318 = vpack.c.b16 %v1174, %v1102
    %v1319 = vpack.c.b16 %v1175, %v1103
    %v1320 = vpack.c.b16 %v1176, %v1104
    %v1321 = vpack.c.b16 %v1177, %v1105
    %v1322 = vpack.c.b16 %v1178, %v1106
    %v1323 = vpack.c.b16 %v1179, %v1107
    %v1324 = vpack.c.b16 %v1180, %v1108
    %v1325 = vpack.c.b16 %v1181, %v1109
    %v1326 = vpack.c.b16 %v1182, %v1110
    %v1327 = vpack.c.b16 %v1183, %v1111
    %v1328 = vpack.c.b16 %v1184, %v1112
    %v1329 = vpack.c.b16 %v1185, %v1113
    %v1330 = vpack.c.b16 %v1186, %v1114
    %v1331 = vpack.c.b16 %v1187, %v1115
    %v1332 = vpack.c.b16 %v1188, %v1116
    %v1333 = vpack.c.b16 %v1189, %v1117
    %v1334 = vpack.c.b16 %v1190, %v1118
    %v1335 = vpack.c.b16 %v1191, %v1119
    %v1336 = vpack.c.b16 %v1192, %v1120
    %v1337 = vpack.c.b16 %v1193, %v1121
    %v1338 = vpack.c.b16 %v1194, %v1122
    %v1339 = vpack.c.b16 %v1195, %v1123
    %v1340 = vpack.c.b16 %v1196, %v1124
    %v1341 = vpack.c.b16 %v1197, %v1125
    %v1342 = vpack.c.b16 %v1198, %v1126
    %v1343 = vpack.c.b16 %v1199, %v1127
    %v1344 = vpack.c.b16 %v1200, %v1128
    %v1345 = vpack.c.b16 %v1201, %v1129
    %v1346 = vpack.c.b16 %v1202, %v1130
    %v1347 = vpack.c.b16 %v1203, %v1131
    %v1348 = vpack.c.b16 %v1204, %v1132
    %v1349 = vpack.c.b16 %v1205, %v1133
    %v1350 = vpack.c.b16 %v1206, %v1134
    %v1351 = vpack.c.b16 %v1207, %v1135
    %v1352 = vpack.c.b16 %v1208, %v1136
    %v1353 = vpack.c.b16 %v1209, %v1137
    %v1354 = vpack.c.b16 %v1210, %v1138
    %v1355 = vpack.c.b16 %v1211, %v1139
    %v1356 = vpack.c.b16 %v1212, %v1140
    %v1357 = vpack.c.b16 %v1213, %v1141
    %v1358 = vpack.c.b16 %v1214, %v1142
    %v1359 = vpack.c.b16 %v1215, %v1143
    %v1360 = vpack.c.b16 %v1216, %v1144
    %v1506 = vsel %vm103, %v262, 0
    %1508 = vmatprep.subr.bf16.mxu0 %v1218
    %1509 = vmatpush1.bf16.msra.mxu0 %v1217
    %1510 = vmatprep.subr.bf16.mxu0 %v1290
    %1511 = vmatpush1.bf16.msra.mxu0 %v1289
    %1512 = vmatprep.subr.bf16.mxu0 0
    %1513 = vmatpush1.bf16.msra.mxu0 0
    %1514 = vmatprep.subr.bf16.mxu0 0
    %1515 = vmatpush1.bf16.msra.mxu0 0
    %1516 = vmatprep.subr.bf16.mxu0 0
    %1517 = vmatpush1.bf16.msra.mxu0 0
    %1518 = vmatprep.subr.bf16.mxu0 0
    %1519 = vmatpush1.bf16.msra.mxu0 0
    %1520 = vmatprep.subr.bf16.mxu0 0
    %1521 = vmatpush1.bf16.msra.mxu0 0
    %1522 = vmatprep.subr.bf16.mxu0 0
    %1523 = vmatpush1.bf16.msra.mxu0 0
    %1524 = vmatprep.subr.bf16.mxu0 0
    %1525 = vmatpush1.bf16.msra.mxu0 0
    %1526 = vmatprep.subr.bf16.mxu0 0
    %1527 = vmatpush1.bf16.msra.mxu0 0
    %1528 = vmatprep.subr.bf16.mxu0 0
    %1529 = vmatpush1.bf16.msra.mxu0 0
    %1530 = vmatprep.subr.bf16.mxu0 0
    %1531 = vmatpush1.bf16.msra.mxu0 0
    %1532 = vmatprep.subr.bf16.mxu0 0
    %1533 = vmatpush1.bf16.msra.mxu0 0
    %1534 = vmatprep.subr.bf16.mxu0 0
    %1535 = vmatpush1.bf16.msra.mxu0 0
    %1536 = vmatprep.subr.bf16.mxu0 0
    %1537 = vmatpush1.bf16.msra.mxu0 0
    %1538 = vmatprep.subr.bf16.mxu0 0
    %1539 = vmatpush1.bf16.msra.mxu0 0
    %1540 = vmatprep.mubr.bf16.mxu0 0
    %1541 = vmatmul.mubr.bf16.gmra.mrb[0].mxu0 %v1506
    %v1542 = vpop.f32.mrb[0].mxu0
    %v1543 = vadd.f32 %v428, %v1542
    %v1544 = vpop.f32.mrb[0].mxu0
    %v1545 = vadd.f32 %v432, %v1544
    %v1546 = vpop.f32.mrb[0].mxu0
    %v1547 = vpop.f32.mrb[0].mxu0
    %1548 = vdwg.mxu0
    %1549 = vmatprep.subr.bf16.mxu0 %v1220
    %1550 = vmatpush1.bf16.msra.mxu0 %v1219
    %1551 = vmatprep.subr.bf16.mxu0 %v1292
    %1552 = vmatpush1.bf16.msra.mxu0 %v1291
    %1553 = vmatprep.subr.bf16.mxu0 0
    %1554 = vmatpush1.bf16.msra.mxu0 0
    %1555 = vmatprep.subr.bf16.mxu0 0
    %1556 = vmatpush1.bf16.msra.mxu0 0
    %1557 = vmatprep.subr.bf16.mxu0 0
    %1558 = vmatpush1.bf16.msra.mxu0 0
    %1559 = vmatprep.subr.bf16.mxu0 0
    %1560 = vmatpush1.bf16.msra.mxu0 0
    %1561 = vmatprep.subr.bf16.mxu0 0
    %1562 = vmatpush1.bf16.msra.mxu0 0
    %1563 = vmatprep.subr.bf16.mxu0 0
    %1564 = vmatpush1.bf16.msra.mxu0 0
    %1565 = vmatprep.subr.bf16.mxu0 0
    %1566 = vmatpush1.bf16.msra.mxu0 0
    %1567 = vmatprep.subr.bf16.mxu0 0
    %1568 = vmatpush1.bf16.msra.mxu0 0
    %1569 = vmatprep.subr.bf16.mxu0 0
    %1570 = vmatpush1.bf16.msra.mxu0 0
    %1571 = vmatprep.subr.bf16.mxu0 0
    %1572 = vmatpush1.bf16.msra.mxu0 0
    %1573 = vmatprep.subr.bf16.mxu0 0
    %1574 = vmatpush1.bf16.msra.mxu0 0
    %1575 = vmatprep.subr.bf16.mxu0 0
    %1576 = vmatpush1.bf16.msra.mxu0 0
    %1577 = vmatprep.subr.bf16.mxu0 0
    %1578 = vmatpush1.bf16.msra.mxu0 0
    %1579 = vmatprep.subr.bf16.mxu0 0
    %1580 = vmatpush1.bf16.msra.mxu0 0
    %1581 = vmatprep.mubr.bf16.mxu0 0
    %1582 = vmatmul.mubr.bf16.gmra.mrb[0].mxu0 %v1506
    %v1583 = vpop.f32.mrb[0].mxu0
    %v1584 = vadd.f32 %v436, %v1583
    %v1585 = vpop.f32.mrb[0].mxu0
    %v1586 = vadd.f32 %v440, %v1585
    %v1587 = vpop.f32.mrb[0].mxu0
    %v1588 = vpop.f32.mrb[0].mxu0
    %1589 = vdwg.mxu0
    %1590 = vmatprep.subr.bf16.mxu0 %v1222
    %1591 = vmatpush1.bf16.msra.mxu0 %v1221
    %1592 = vmatprep.subr.bf16.mxu0 %v1294
    %1593 = vmatpush1.bf16.msra.mxu0 %v1293
    %1594 = vmatprep.subr.bf16.mxu0 0
    %1595 = vmatpush1.bf16.msra.mxu0 0
    %1596 = vmatprep.subr.bf16.mxu0 0
    %1597 = vmatpush1.bf16.msra.mxu0 0
    %1598 = vmatprep.subr.bf16.mxu0 0
    %1599 = vmatpush1.bf16.msra.mxu0 0
    %1600 = vmatprep.subr.bf16.mxu0 0
    %1601 = vmatpush1.bf16.msra.mxu0 0
    %1602 = vmatprep.subr.bf16.mxu0 0
    %1603 = vmatpush1.bf16.msra.mxu0 0
    %1604 = vmatprep.subr.bf16.mxu0 0
    %1605 = vmatpush1.bf16.msra.mxu0 0
    %1606 = vmatprep.subr.bf16.mxu0 0
    %1607 = vmatpush1.bf16.msra.mxu0 0
    %1608 = vmatprep.subr.bf16.mxu0 0
    %1609 = vmatpush1.bf16.msra.mxu0 0
    %1610 = vmatprep.subr.bf16.mxu0 0
    %1611 = vmatpush1.bf16.msra.mxu0 0
    %1612 = vmatprep.subr.bf16.mxu0 0
    %1613 = vmatpush1.bf16.msra.mxu0 0
    %1614 = vmatprep.subr.bf16.mxu0 0
    %1615 = vmatpush1.bf16.msra.mxu0 0
    %1616 = vmatprep.subr.bf16.mxu0 0
    %1617 = vmatpush1.bf16.msra.mxu0 0
    %1618 = vmatprep.subr.bf16.mxu0 0
    %1619 = vmatpush1.bf16.msra.mxu0 0
    %1620 = vmatprep.subr.bf16.mxu0 0
    %1621 = vmatpush1.bf16.msra.mxu0 0
    %1622 = vmatprep.mubr.bf16.mxu0 0
    %1623 = vmatmul.mubr.bf16.gmra.mrb[0].mxu0 %v1506
    %v1624 = vpop.f32.mrb[0].mxu0
    %v1625 = vadd.f32 %v444, %v1624
    %v1626 = vpop.f32.mrb[0].mxu0
    %v1627 = vadd.f32 %v448, %v1626
    %v1628 = vpop.f32.mrb[0].mxu0
    %v1629 = vpop.f32.mrb[0].mxu0
    %1630 = vdwg.mxu0
    %1631 = vmatprep.subr.bf16.mxu0 %v1224
    %1632 = vmatpush1.bf16.msra.mxu0 %v1223
    %1633 = vmatprep.subr.bf16.mxu0 %v1296
    %1634 = vmatpush1.bf16.msra.mxu0 %v1295
    %1635 = vmatprep.subr.bf16.mxu0 0
    %1636 = vmatpush1.bf16.msra.mxu0 0
    %1637 = vmatprep.subr.bf16.mxu0 0
    %1638 = vmatpush1.bf16.msra.mxu0 0
    %1639 = vmatprep.subr.bf16.mxu0 0
    %1640 = vmatpush1.bf16.msra.mxu0 0
    %1641 = vmatprep.subr.bf16.mxu0 0
    %1642 = vmatpush1.bf16.msra.mxu0 0
    %1643 = vmatprep.subr.bf16.mxu0 0
    %1644 = vmatpush1.bf16.msra.mxu0 0
    %1645 = vmatprep.subr.bf16.mxu0 0
    %1646 = vmatpush1.bf16.msra.mxu0 0
    %1647 = vmatprep.subr.bf16.mxu0 0
    %1648 = vmatpush1.bf16.msra.mxu0 0
    %1649 = vmatprep.subr.bf16.mxu0 0
    %1650 = vmatpush1.bf16.msra.mxu0 0
    %1651 = vmatprep.subr.bf16.mxu0 0
    %1652 = vmatpush1.bf16.msra.mxu0 0
    %1653 = vmatprep.subr.bf16.mxu0 0
    %1654 = vmatpush1.bf16.msra.mxu0 0
    %1655 = vmatprep.subr.bf16.mxu0 0
    %1656 = vmatpush1.bf16.msra.mxu0 0
    %1657 = vmatprep.subr.bf16.mxu0 0
    %1658 = vmatpush1.bf16.msra.mxu0 0
    %1659 = vmatprep.subr.bf16.mxu0 0
    %1660 = vmatpush1.bf16.msra.mxu0 0
    %1661 = vmatprep.subr.bf16.mxu0 0
    %1662 = vmatpush1.bf16.msra.mxu0 0
    %1663 = vmatprep.mubr.bf16.mxu0 0
    %1664 = vmatmul.mubr.bf16.gmra.mrb[0].mxu0 %v1506
    %v1665 = vpop.f32.mrb[0].mxu0
    %v1666 = vadd.f32 %v452, %v1665
    %v1667 = vpop.f32.mrb[0].mxu0
    %v1668 = vadd.f32 %v456, %v1667
    %v1669 = vpop.f32.mrb[0].mxu0
    %v1670 = vpop.f32.mrb[0].mxu0
    %1671 = vdwg.mxu0
    %1672 = vmatprep.subr.bf16.mxu0 %v1226
    %1673 = vmatpush1.bf16.msra.mxu0 %v1225
    %1674 = vmatprep.subr.bf16.mxu0 %v1298
    %1675 = vmatpush1.bf16.msra.mxu0 %v1297
    %1676 = vmatprep.subr.bf16.mxu0 0
    %1677 = vmatpush1.bf16.msra.mxu0 0
    %1678 = vmatprep.subr.bf16.mxu0 0
    %1679 = vmatpush1.bf16.msra.mxu0 0
    %1680 = vmatprep.subr.bf16.mxu0 0
    %1681 = vmatpush1.bf16.msra.mxu0 0
    %1682 = vmatprep.subr.bf16.mxu0 0
    %1683 = vmatpush1.bf16.msra.mxu0 0
    %1684 = vmatprep.subr.bf16.mxu0 0
    %1685 = vmatpush1.bf16.msra.mxu0 0
    %1686 = vmatprep.subr.bf16.mxu0 0
    %1687 = vmatpush1.bf16.msra.mxu0 0
    %1688 = vmatprep.subr.bf16.mxu0 0
    %1689 = vmatpush1.bf16.msra.mxu0 0
    %1690 = vmatprep.subr.bf16.mxu0 0
    %1691 = vmatpush1.bf16.msra.mxu0 0
    %1692 = vmatprep.subr.bf16.mxu0 0
    %1693 = vmatpush1.bf16.msra.mxu0 0
    %1694 = vmatprep.subr.bf16.mxu0 0
    %1695 = vmatpush1.bf16.msra.mxu0 0
    %1696 = vmatprep.subr.bf16.mxu0 0
    %1697 = vmatpush1.bf16.msra.mxu0 0
    %1698 = vmatprep.subr.bf16.mxu0 0
    %1699 = vmatpush1.bf16.msra.mxu0 0
    %1700 = vmatprep.subr.bf16.mxu0 0
    %1701 = vmatpush1.bf16.msra.mxu0 0
    %1702 = vmatprep.subr.bf16.mxu0 0
    %1703 = vmatpush1.bf16.msra.mxu0 0
    %1704 = vmatprep.mubr.bf16.mxu0 0
    %1705 = vmatmul.mubr.bf16.gmra.mrb[0].mxu0 %v1506
    %v1706 = vpop.f32.mrb[0].mxu0
    %v1707 = vadd.f32 %v460, %v1706
    %v1708 = vpop.f32.mrb[0].mxu0
    %v1709 = vadd.f32 %v464, %v1708
    %v1710 = vpop.f32.mrb[0].mxu0
    %v1711 = vpop.f32.mrb[0].mxu0
    %1712 = vdwg.mxu0
    %1713 = vmatprep.subr.bf16.mxu0 %v1228
    %1714 = vmatpush1.bf16.msra.mxu0 %v1227
    %1715 = vmatprep.subr.bf16.mxu0 %v1300
    %1716 = vmatpush1.bf16.msra.mxu0 %v1299
    %1717 = vmatprep.subr.bf16.mxu0 0
    %1718 = vmatpush1.bf16.msra.mxu0 0
    %1719 = vmatprep.subr.bf16.mxu0 0
    %1720 = vmatpush1.bf16.msra.mxu0 0
    %1721 = vmatprep.subr.bf16.mxu0 0
    %1722 = vmatpush1.bf16.msra.mxu0 0
    %1723 = vmatprep.subr.bf16.mxu0 0
    %1724 = vmatpush1.bf16.msra.mxu0 0
    %1725 = vmatprep.subr.bf16.mxu0 0
    %1726 = vmatpush1.bf16.msra.mxu0 0
    %1727 = vmatprep.subr.bf16.mxu0 0
    %1728 = vmatpush1.bf16.msra.mxu0 0
    %1729 = vmatprep.subr.bf16.mxu0 0
    %1730 = vmatpush1.bf16.msra.mxu0 0
    %1731 = vmatprep.subr.bf16.mxu0 0
    %1732 = vmatpush1.bf16.msra.mxu0 0
    %1733 = vmatprep.subr.bf16.mxu0 0
    %1734 = vmatpush1.bf16.msra.mxu0 0
    %1735 = vmatprep.subr.bf16.mxu0 0
    %1736 = vmatpush1.bf16.msra.mxu0 0
    %1737 = vmatprep.subr.bf16.mxu0 0
    %1738 = vmatpush1.bf16.msra.mxu0 0
    %1739 = vmatprep.subr.bf16.mxu0 0
    %1740 = vmatpush1.bf16.msra.mxu0 0
    %1741 = vmatprep.subr.bf16.mxu0 0
    %1742 = vmatpush1.bf16.msra.mxu0 0
    %1743 = vmatprep.subr.bf16.mxu0 0
    %1744 = vmatpush1.bf16.msra.mxu0 0
    %1745 = vmatprep.mubr.bf16.mxu0 0
    %1746 = vmatmul.mubr.bf16.gmra.mrb[0].mxu0 %v1506
    %v1747 = vpop.f32.mrb[0].mxu0
    %v1748 = vadd.f32 %v468, %v1747
    %v1749 = vpop.f32.mrb[0].mxu0
    %v1750 = vadd.f32 %v472, %v1749
    %v1751 = vpop.f32.mrb[0].mxu0
    %v1752 = vpop.f32.mrb[0].mxu0
    %1753 = vdwg.mxu0
    %1754 = vmatprep.subr.bf16.mxu0 %v1230
    %1755 = vmatpush1.bf16.msra.mxu0 %v1229
    %1756 = vmatprep.subr.bf16.mxu0 %v1302
    %1757 = vmatpush1.bf16.msra.mxu0 %v1301
    %1758 = vmatprep.subr.bf16.mxu0 0
    %1759 = vmatpush1.bf16.msra.mxu0 0
    %1760 = vmatprep.subr.bf16.mxu0 0
    %1761 = vmatpush1.bf16.msra.mxu0 0
    %1762 = vmatprep.subr.bf16.mxu0 0
    %1763 = vmatpush1.bf16.msra.mxu0 0
    %1764 = vmatprep.subr.bf16.mxu0 0
    %1765 = vmatpush1.bf16.msra.mxu0 0
    %1766 = vmatprep.subr.bf16.mxu0 0
    %1767 = vmatpush1.bf16.msra.mxu0 0
    %1768 = vmatprep.subr.bf16.mxu0 0
    %1769 = vmatpush1.bf16.msra.mxu0 0
    %1770 = vmatprep.subr.bf16.mxu0 0
    %1771 = vmatpush1.bf16.msra.mxu0 0
    %1772 = vmatprep.subr.bf16.mxu0 0
    %1773 = vmatpush1.bf16.msra.mxu0 0
    %1774 = vmatprep.subr.bf16.mxu0 0
    %1775 = vmatpush1.bf16.msra.mxu0 0
    %1776 = vmatprep.subr.bf16.mxu0 0
    %1777 = vmatpush1.bf16.msra.mxu0 0
    %1778 = vmatprep.subr.bf16.mxu0 0
    %1779 = vmatpush1.bf16.msra.mxu0 0
    %1780 = vmatprep.subr.bf16.mxu0 0
    %1781 = vmatpush1.bf16.msra.mxu0 0
    %1782 = vmatprep.subr.bf16.mxu0 0
    %1783 = vmatpush1.bf16.msra.mxu0 0
    %1784 = vmatprep.subr.bf16.mxu0 0
    %1785 = vmatpush1.bf16.msra.mxu0 0
    %1786 = vmatprep.mubr.bf16.mxu0 0
    %1787 = vmatmul.mubr.bf16.gmra.mrb[0].mxu0 %v1506
    %v1788 = vpop.f32.mrb[0].mxu0
    %v1789 = vadd.f32 %v476, %v1788
    %v1790 = vpop.f32.mrb[0].mxu0
    %v1791 = vadd.f32 %v480, %v1790
    %v1792 = vpop.f32.mrb[0].mxu0
    %v1793 = vpop.f32.mrb[0].mxu0
    %1794 = vdwg.mxu0
    %1795 = vmatprep.subr.bf16.mxu0 %v1232
    %1796 = vmatpush1.bf16.msra.mxu0 %v1231
    %1797 = vmatprep.subr.bf16.mxu0 %v1304
    %1798 = vmatpush1.bf16.msra.mxu0 %v1303
    %1799 = vmatprep.subr.bf16.mxu0 0
    %1800 = vmatpush1.bf16.msra.mxu0 0
    %1801 = vmatprep.subr.bf16.mxu0 0
    %1802 = vmatpush1.bf16.msra.mxu0 0
    %1803 = vmatprep.subr.bf16.mxu0 0
    %1804 = vmatpush1.bf16.msra.mxu0 0
    %1805 = vmatprep.subr.bf16.mxu0 0
    %1806 = vmatpush1.bf16.msra.mxu0 0
    %1807 = vmatprep.subr.bf16.mxu0 0
    %1808 = vmatpush1.bf16.msra.mxu0 0
    %1809 = vmatprep.subr.bf16.mxu0 0
    %1810 = vmatpush1.bf16.msra.mxu0 0
    %1811 = vmatprep.subr.bf16.mxu0 0
    %1812 = vmatpush1.bf16.msra.mxu0 0
    %1813 = vmatprep.subr.bf16.mxu0 0
    %1814 = vmatpush1.bf16.msra.mxu0 0
    %1815 = vmatprep.subr.bf16.mxu0 0
    %1816 = vmatpush1.bf16.msra.mxu0 0
    %1817 = vmatprep.subr.bf16.mxu0 0
    %1818 = vmatpush1.bf16.msra.mxu0 0
    %1819 = vmatprep.subr.bf16.mxu0 0
    %1820 = vmatpush1.bf16.msra.mxu0 0
    %1821 = vmatprep.subr.bf16.mxu0 0
    %1822 = vmatpush1.bf16.msra.mxu0 0
    %1823 = vmatprep.subr.bf16.mxu0 0
    %1824 = vmatpush1.bf16.msra.mxu0 0
    %1825 = vmatprep.subr.bf16.mxu0 0
    %1826 = vmatpush1.bf16.msra.mxu0 0
    %1827 = vmatprep.mubr.bf16.mxu0 0
    %1828 = vmatmul.mubr.bf16.gmra.mrb[0].mxu0 %v1506
    %v1829 = vpop.f32.mrb[0].mxu0
    %v1830 = vadd.f32 %v484, %v1829
    %v1831 = vpop.f32.mrb[0].mxu0
    %v1832 = vadd.f32 %v488, %v1831
    %v1833 = vpop.f32.mrb[0].mxu0
    %v1834 = vpop.f32.mrb[0].mxu0
    %1835 = vdwg.mxu0
    %1836 = vmatprep.subr.bf16.mxu0 %v1234
    %1837 = vmatpush1.bf16.msra.mxu0 %v1233
    %1838 = vmatprep.subr.bf16.mxu0 %v1306
    %1839 = vmatpush1.bf16.msra.mxu0 %v1305
    %1840 = vmatprep.subr.bf16.mxu0 0
    %1841 = vmatpush1.bf16.msra.mxu0 0
    %1842 = vmatprep.subr.bf16.mxu0 0
    %1843 = vmatpush1.bf16.msra.mxu0 0
    %1844 = vmatprep.subr.bf16.mxu0 0
    %1845 = vmatpush1.bf16.msra.mxu0 0
    %1846 = vmatprep.subr.bf16.mxu0 0
    %1847 = vmatpush1.bf16.msra.mxu0 0
    %1848 = vmatprep.subr.bf16.mxu0 0
    %1849 = vmatpush1.bf16.msra.mxu0 0
    %1850 = vmatprep.subr.bf16.mxu0 0
    %1851 = vmatpush1.bf16.msra.mxu0 0
    %1852 = vmatprep.subr.bf16.mxu0 0
    %1853 = vmatpush1.bf16.msra.mxu0 0
    %1854 = vmatprep.subr.bf16.mxu0 0
    %1855 = vmatpush1.bf16.msra.mxu0 0
    %1856 = vmatprep.subr.bf16.mxu0 0
    %1857 = vmatpush1.bf16.msra.mxu0 0
    %1858 = vmatprep.subr.bf16.mxu0 0
    %1859 = vmatpush1.bf16.msra.mxu0 0
    %1860 = vmatprep.subr.bf16.mxu0 0
    %1861 = vmatpush1.bf16.msra.mxu0 0
    %1862 = vmatprep.subr.bf16.mxu0 0
    %1863 = vmatpush1.bf16.msra.mxu0 0
    %1864 = vmatprep.subr.bf16.mxu0 0
    %1865 = vmatpush1.bf16.msra.mxu0 0
    %1866 = vmatprep.subr.bf16.mxu0 0
    %1867 = vmatpush1.bf16.msra.mxu0 0
    %1868 = vmatprep.mubr.bf16.mxu0 0
    %1869 = vmatmul.mubr.bf16.gmra.mrb[0].mxu0 %v1506
    %v1870 = vpop.f32.mrb[0].mxu0
    %v1871 = vadd.f32 %v492, %v1870
    %v1872 = vpop.f32.mrb[0].mxu0
    %v1873 = vadd.f32 %v496, %v1872
    %v1874 = vpop.f32.mrb[0].mxu0
    %v1875 = vpop.f32.mrb[0].mxu0
    %1876 = vdwg.mxu0
    %1877 = vmatprep.subr.bf16.mxu0 %v1236
    %1878 = vmatpush1.bf16.msra.mxu0 %v1235
    %1879 = vmatprep.subr.bf16.mxu0 %v1308
    %1880 = vmatpush1.bf16.msra.mxu0 %v1307
    %1881 = vmatprep.subr.bf16.mxu0 0
    %1882 = vmatpush1.bf16.msra.mxu0 0
    %1883 = vmatprep.subr.bf16.mxu0 0
    %1884 = vmatpush1.bf16.msra.mxu0 0
    %1885 = vmatprep.subr.bf16.mxu0 0
    %1886 = vmatpush1.bf16.msra.mxu0 0
    %1887 = vmatprep.subr.bf16.mxu0 0
    %1888 = vmatpush1.bf16.msra.mxu0 0
    %1889 = vmatprep.subr.bf16.mxu0 0
    %1890 = vmatpush1.bf16.msra.mxu0 0
    %1891 = vmatprep.subr.bf16.mxu0 0
    %1892 = vmatpush1.bf16.msra.mxu0 0
    %1893 = vmatprep.subr.bf16.mxu0 0
    %1894 = vmatpush1.bf16.msra.mxu0 0
    %1895 = vmatprep.subr.bf16.mxu0 0
    %1896 = vmatpush1.bf16.msra.mxu0 0
    %1897 = vmatprep.subr.bf16.mxu0 0
    %1898 = vmatpush1.bf16.msra.mxu0 0
    %1899 = vmatprep.subr.bf16.mxu0 0
    %1900 = vmatpush1.bf16.msra.mxu0 0
    %1901 = vmatprep.subr.bf16.mxu0 0
    %1902 = vmatpush1.bf16.msra.mxu0 0
    %1903 = vmatprep.subr.bf16.mxu0 0
    %1904 = vmatpush1.bf16.msra.mxu0 0
    %1905 = vmatprep.subr.bf16.mxu0 0
    %1906 = vmatpush1.bf16.msra.mxu0 0
    %1907 = vmatprep.subr.bf16.mxu0 0
    %1908 = vmatpush1.bf16.msra.mxu0 0
    %1909 = vmatprep.mubr.bf16.mxu0 0
    %1910 = vmatmul.mubr.bf16.gmra.mrb[0].mxu0 %v1506
    %v1911 = vpop.f32.mrb[0].mxu0
    %v1912 = vadd.f32 %v500, %v1911
    %v1913 = vpop.f32.mrb[0].mxu0
    %v1914 = vadd.f32 %v504, %v1913
    %v1915 = vpop.f32.mrb[0].mxu0
    %v1916 = vpop.f32.mrb[0].mxu0
    %1917 = vdwg.mxu0
    %1918 = vmatprep.subr.bf16.mxu0 %v1238
    %1919 = vmatpush1.bf16.msra.mxu0 %v1237
    %1920 = vmatprep.subr.bf16.mxu0 %v1310
    %1921 = vmatpush1.bf16.msra.mxu0 %v1309
    %1922 = vmatprep.subr.bf16.mxu0 0
    %1923 = vmatpush1.bf16.msra.mxu0 0
    %1924 = vmatprep.subr.bf16.mxu0 0
    %1925 = vmatpush1.bf16.msra.mxu0 0
    %1926 = vmatprep.subr.bf16.mxu0 0
    %1927 = vmatpush1.bf16.msra.mxu0 0
    %1928 = vmatprep.subr.bf16.mxu0 0
    %1929 = vmatpush1.bf16.msra.mxu0 0
    %1930 = vmatprep.subr.bf16.mxu0 0
    %1931 = vmatpush1.bf16.msra.mxu0 0
    %1932 = vmatprep.subr.bf16.mxu0 0
    %1933 = vmatpush1.bf16.msra.mxu0 0
    %1934 = vmatprep.subr.bf16.mxu0 0
    %1935 = vmatpush1.bf16.msra.mxu0 0
    %1936 = vmatprep.subr.bf16.mxu0 0
    %1937 = vmatpush1.bf16.msra.mxu0 0
    %1938 = vmatprep.subr.bf16.mxu0 0
    %1939 = vmatpush1.bf16.msra.mxu0 0
    %1940 = vmatprep.subr.bf16.mxu0 0
    %1941 = vmatpush1.bf16.msra.mxu0 0
    %1942 = vmatprep.subr.bf16.mxu0 0
    %1943 = vmatpush1.bf16.msra.mxu0 0
    %1944 = vmatprep.subr.bf16.mxu0 0
    %1945 = vmatpush1.bf16.msra.mxu0 0
    %1946 = vmatprep.subr.bf16.mxu0 0
    %1947 = vmatpush1.bf16.msra.mxu0 0
    %1948 = vmatprep.subr.bf16.mxu0 0
    %1949 = vmatpush1.bf16.msra.mxu0 0
    %1950 = vmatprep.mubr.bf16.mxu0 0
    %1951 = vmatmul.mubr.bf16.gmra.mrb[0].mxu0 %v1506
    %v1952 = vpop.f32.mrb[0].mxu0
    %v1953 = vadd.f32 %v508, %v1952
    %v1954 = vpop.f32.mrb[0].mxu0
    %v1955 = vadd.f32 %v512, %v1954
    %v1956 = vpop.f32.mrb[0].mxu0
    %v1957 = vpop.f32.mrb[0].mxu0
    %1958 = vdwg.mxu0
    %1959 = vmatprep.subr.bf16.mxu0 %v1240
    %1960 = vmatpush1.bf16.msra.mxu0 %v1239
    %1961 = vmatprep.subr.bf16.mxu0 %v1312
    %1962 = vmatpush1.bf16.msra.mxu0 %v1311
    %1963 = vmatprep.subr.bf16.mxu0 0
    %1964 = vmatpush1.bf16.msra.mxu0 0
    %1965 = vmatprep.subr.bf16.mxu0 0
    %1966 = vmatpush1.bf16.msra.mxu0 0
    %1967 = vmatprep.subr.bf16.mxu0 0
    %1968 = vmatpush1.bf16.msra.mxu0 0
    %1969 = vmatprep.subr.bf16.mxu0 0
    %1970 = vmatpush1.bf16.msra.mxu0 0
    %1971 = vmatprep.subr.bf16.mxu0 0
    %1972 = vmatpush1.bf16.msra.mxu0 0
    %1973 = vmatprep.subr.bf16.mxu0 0
    %1974 = vmatpush1.bf16.msra.mxu0 0
    %1975 = vmatprep.subr.bf16.mxu0 0
    %1976 = vmatpush1.bf16.msra.mxu0 0
    %1977 = vmatprep.subr.bf16.mxu0 0
    %1978 = vmatpush1.bf16.msra.mxu0 0
    %1979 = vmatprep.subr.bf16.mxu0 0
    %1980 = vmatpush1.bf16.msra.mxu0 0
    %1981 = vmatprep.subr.bf16.mxu0 0
    %1982 = vmatpush1.bf16.msra.mxu0 0
    %1983 = vmatprep.subr.bf16.mxu0 0
    %1984 = vmatpush1.bf16.msra.mxu0 0
    %1985 = vmatprep.subr.bf16.mxu0 0
    %1986 = vmatpush1.bf16.msra.mxu0 0
    %1987 = vmatprep.subr.bf16.mxu0 0
    %1988 = vmatpush1.bf16.msra.mxu0 0
    %1989 = vmatprep.subr.bf16.mxu0 0
    %1990 = vmatpush1.bf16.msra.mxu0 0
    %1991 = vmatprep.mubr.bf16.mxu0 0
    %1992 = vmatmul.mubr.bf16.gmra.mrb[0].mxu0 %v1506
    %v1993 = vpop.f32.mrb[0].mxu0
    %v1994 = vadd.f32 %v516, %v1993
    %v1995 = vpop.f32.mrb[0].mxu0
    %v1996 = vadd.f32 %v520, %v1995
    %v1997 = vpop.f32.mrb[0].mxu0
    %v1998 = vpop.f32.mrb[0].mxu0
    %1999 = vdwg.mxu0
    %2000 = vmatprep.subr.bf16.mxu0 %v1242
    %2001 = vmatpush1.bf16.msra.mxu0 %v1241
    %2002 = vmatprep.subr.bf16.mxu0 %v1314
    %2003 = vmatpush1.bf16.msra.mxu0 %v1313
    %2004 = vmatprep.subr.bf16.mxu0 0
    %2005 = vmatpush1.bf16.msra.mxu0 0
    %2006 = vmatprep.subr.bf16.mxu0 0
    %2007 = vmatpush1.bf16.msra.mxu0 0
    %2008 = vmatprep.subr.bf16.mxu0 0
    %2009 = vmatpush1.bf16.msra.mxu0 0
    %2010 = vmatprep.subr.bf16.mxu0 0
    %2011 = vmatpush1.bf16.msra.mxu0 0
    %2012 = vmatprep.subr.bf16.mxu0 0
    %2013 = vmatpush1.bf16.msra.mxu0 0
    %2014 = vmatprep.subr.bf16.mxu0 0
    %2015 = vmatpush1.bf16.msra.mxu0 0
    %2016 = vmatprep.subr.bf16.mxu0 0
    %2017 = vmatpush1.bf16.msra.mxu0 0
    %2018 = vmatprep.subr.bf16.mxu0 0
    %2019 = vmatpush1.bf16.msra.mxu0 0
    %2020 = vmatprep.subr.bf16.mxu0 0
    %2021 = vmatpush1.bf16.msra.mxu0 0
    %2022 = vmatprep.subr.bf16.mxu0 0
    %2023 = vmatpush1.bf16.msra.mxu0 0
    %2024 = vmatprep.subr.bf16.mxu0 0
    %2025 = vmatpush1.bf16.msra.mxu0 0
    %2026 = vmatprep.subr.bf16.mxu0 0
    %2027 = vmatpush1.bf16.msra.mxu0 0
    %2028 = vmatprep.subr.bf16.mxu0 0
    %2029 = vmatpush1.bf16.msra.mxu0 0
    %2030 = vmatprep.subr.bf16.mxu0 0
    %2031 = vmatpush1.bf16.msra.mxu0 0
    %2032 = vmatprep.mubr.bf16.mxu0 0
    %2033 = vmatmul.mubr.bf16.gmra.mrb[0].mxu0 %v1506
    %v2034 = vpop.f32.mrb[0].mxu0
    %v2035 = vadd.f32 %v524, %v2034
    %v2036 = vpop.f32.mrb[0].mxu0
    %v2037 = vadd.f32 %v528, %v2036
    %v2038 = vpop.f32.mrb[0].mxu0
    %v2039 = vpop.f32.mrb[0].mxu0
    %2040 = vdwg.mxu0
    %2041 = vmatprep.subr.bf16.mxu0 %v1244
    %2042 = vmatpush1.bf16.msra.mxu0 %v1243
    %2043 = vmatprep.subr.bf16.mxu0 %v1316
    %2044 = vmatpush1.bf16.msra.mxu0 %v1315
    %2045 = vmatprep.subr.bf16.mxu0 0
    %2046 = vmatpush1.bf16.msra.mxu0 0
    %2047 = vmatprep.subr.bf16.mxu0 0
    %2048 = vmatpush1.bf16.msra.mxu0 0
    %2049 = vmatprep.subr.bf16.mxu0 0
    %2050 = vmatpush1.bf16.msra.mxu0 0
    %2051 = vmatprep.subr.bf16.mxu0 0
    %2052 = vmatpush1.bf16.msra.mxu0 0
    %2053 = vmatprep.subr.bf16.mxu0 0
    %2054 = vmatpush1.bf16.msra.mxu0 0
    %2055 = vmatprep.subr.bf16.mxu0 0
    %2056 = vmatpush1.bf16.msra.mxu0 0
    %2057 = vmatprep.subr.bf16.mxu0 0
    %2058 = vmatpush1.bf16.msra.mxu0 0
    %2059 = vmatprep.subr.bf16.mxu0 0
    %2060 = vmatpush1.bf16.msra.mxu0 0
    %2061 = vmatprep.subr.bf16.mxu0 0
    %2062 = vmatpush1.bf16.msra.mxu0 0
    %2063 = vmatprep.subr.bf16.mxu0 0
    %2064 = vmatpush1.bf16.msra.mxu0 0
    %2065 = vmatprep.subr.bf16.mxu0 0
    %2066 = vmatpush1.bf16.msra.mxu0 0
    %2067 = vmatprep.subr.bf16.mxu0 0
    %2068 = vmatpush1.bf16.msra.mxu0 0
    %2069 = vmatprep.subr.bf16.mxu0 0
    %2070 = vmatpush1.bf16.msra.mxu0 0
    %2071 = vmatprep.subr.bf16.mxu0 0
    %2072 = vmatpush1.bf16.msra.mxu0 0
    %2073 = vmatprep.mubr.bf16.mxu0 0
    %2074 = vmatmul.mubr.bf16.gmra.mrb[0].mxu0 %v1506
    %v2075 = vpop.f32.mrb[0].mxu0
    %v2076 = vadd.f32 %v532, %v2075
    %v2077 = vpop.f32.mrb[0].mxu0
    %v2078 = vadd.f32 %v536, %v2077
    %v2079 = vpop.f32.mrb[0].mxu0
    %v2080 = vpop.f32.mrb[0].mxu0
    %2081 = vdwg.mxu0
    %2082 = vmatprep.subr.bf16.mxu0 %v1246
    %2083 = vmatpush1.bf16.msra.mxu0 %v1245
    %2084 = vmatprep.subr.bf16.mxu0 %v1318
    %2085 = vmatpush1.bf16.msra.mxu0 %v1317
    %2086 = vmatprep.subr.bf16.mxu0 0
    %2087 = vmatpush1.bf16.msra.mxu0 0
    %2088 = vmatprep.subr.bf16.mxu0 0
    %2089 = vmatpush1.bf16.msra.mxu0 0
    %2090 = vmatprep.subr.bf16.mxu0 0
    %2091 = vmatpush1.bf16.msra.mxu0 0
    %2092 = vmatprep.subr.bf16.mxu0 0
    %2093 = vmatpush1.bf16.msra.mxu0 0
    %2094 = vmatprep.subr.bf16.mxu0 0
    %2095 = vmatpush1.bf16.msra.mxu0 0
    %2096 = vmatprep.subr.bf16.mxu0 0
    %2097 = vmatpush1.bf16.msra.mxu0 0
    %2098 = vmatprep.subr.bf16.mxu0 0
    %2099 = vmatpush1.bf16.msra.mxu0 0
    %2100 = vmatprep.subr.bf16.mxu0 0
    %2101 = vmatpush1.bf16.msra.mxu0 0
    %2102 = vmatprep.subr.bf16.mxu0 0
    %2103 = vmatpush1.bf16.msra.mxu0 0
    %2104 = vmatprep.subr.bf16.mxu0 0
    %2105 = vmatpush1.bf16.msra.mxu0 0
    %2106 = vmatprep.subr.bf16.mxu0 0
    %2107 = vmatpush1.bf16.msra.mxu0 0
    %2108 = vmatprep.subr.bf16.mxu0 0
    %2109 = vmatpush1.bf16.msra.mxu0 0
    %2110 = vmatprep.subr.bf16.mxu0 0
    %2111 = vmatpush1.bf16.msra.mxu0 0
    %2112 = vmatprep.subr.bf16.mxu0 0
    %2113 = vmatpush1.bf16.msra.mxu0 0
    %2114 = vmatprep.mubr.bf16.mxu0 0
    %2115 = vmatmul.mubr.bf16.gmra.mrb[0].mxu0 %v1506
    %v2116 = vpop.f32.mrb[0].mxu0
    %v2117 = vadd.f32 %v540, %v2116
    %v2118 = vpop.f32.mrb[0].mxu0
    %v2119 = vadd.f32 %v544, %v2118
    %v2120 = vpop.f32.mrb[0].mxu0
    %v2121 = vpop.f32.mrb[0].mxu0
    %2122 = vdwg.mxu0
    %2123 = vmatprep.subr.bf16.mxu0 %v1248
    %2124 = vmatpush1.bf16.msra.mxu0 %v1247
    %2125 = vmatprep.subr.bf16.mxu0 %v1320
    %2126 = vmatpush1.bf16.msra.mxu0 %v1319
    %2127 = vmatprep.subr.bf16.mxu0 0
    %2128 = vmatpush1.bf16.msra.mxu0 0
    %2129 = vmatprep.subr.bf16.mxu0 0
    %2130 = vmatpush1.bf16.msra.mxu0 0
    %2131 = vmatprep.subr.bf16.mxu0 0
    %2132 = vmatpush1.bf16.msra.mxu0 0
    %2133 = vmatprep.subr.bf16.mxu0 0
    %2134 = vmatpush1.bf16.msra.mxu0 0
    %2135 = vmatprep.subr.bf16.mxu0 0
    %2136 = vmatpush1.bf16.msra.mxu0 0
    %2137 = vmatprep.subr.bf16.mxu0 0
    %2138 = vmatpush1.bf16.msra.mxu0 0
    %2139 = vmatprep.subr.bf16.mxu0 0
    %2140 = vmatpush1.bf16.msra.mxu0 0
    %2141 = vmatprep.subr.bf16.mxu0 0
    %2142 = vmatpush1.bf16.msra.mxu0 0
    %2143 = vmatprep.subr.bf16.mxu0 0
    %2144 = vmatpush1.bf16.msra.mxu0 0
    %2145 = vmatprep.subr.bf16.mxu0 0
    %2146 = vmatpush1.bf16.msra.mxu0 0
    %2147 = vmatprep.subr.bf16.mxu0 0
    %2148 = vmatpush1.bf16.msra.mxu0 0
    %2149 = vmatprep.subr.bf16.mxu0 0
    %2150 = vmatpush1.bf16.msra.mxu0 0
    %2151 = vmatprep.subr.bf16.mxu0 0
    %2152 = vmatpush1.bf16.msra.mxu0 0
    %2153 = vmatprep.subr.bf16.mxu0 0
    %2154 = vmatpush1.bf16.msra.mxu0 0
    %2155 = vmatprep.mubr.bf16.mxu0 0
    %2156 = vmatmul.mubr.bf16.gmra.mrb[0].mxu0 %v1506
    %v2157 = vpop.f32.mrb[0].mxu0
    %v2158 = vadd.f32 %v548, %v2157
    %v2159 = vpop.f32.mrb[0].mxu0
    %v2160 = vadd.f32 %v552, %v2159
    %v2161 = vpop.f32.mrb[0].mxu0
    %v2162 = vpop.f32.mrb[0].mxu0
    %2163 = vdwg.mxu0
    %2164 = vmatprep.subr.bf16.mxu0 %v1250
    %2165 = vmatpush1.bf16.msra.mxu0 %v1249
    %2166 = vmatprep.subr.bf16.mxu0 %v1322
    %2167 = vmatpush1.bf16.msra.mxu0 %v1321
    %2168 = vmatprep.subr.bf16.mxu0 0
    %2169 = vmatpush1.bf16.msra.mxu0 0
    %2170 = vmatprep.subr.bf16.mxu0 0
    %2171 = vmatpush1.bf16.msra.mxu0 0
    %2172 = vmatprep.subr.bf16.mxu0 0
    %2173 = vmatpush1.bf16.msra.mxu0 0
    %2174 = vmatprep.subr.bf16.mxu0 0
    %2175 = vmatpush1.bf16.msra.mxu0 0
    %2176 = vmatprep.subr.bf16.mxu0 0
    %2177 = vmatpush1.bf16.msra.mxu0 0
    %2178 = vmatprep.subr.bf16.mxu0 0
    %2179 = vmatpush1.bf16.msra.mxu0 0
    %2180 = vmatprep.subr.bf16.mxu0 0
    %2181 = vmatpush1.bf16.msra.mxu0 0
    %2182 = vmatprep.subr.bf16.mxu0 0
    %2183 = vmatpush1.bf16.msra.mxu0 0
    %2184 = vmatprep.subr.bf16.mxu0 0
    %2185 = vmatpush1.bf16.msra.mxu0 0
    %2186 = vmatprep.subr.bf16.mxu0 0
    %2187 = vmatpush1.bf16.msra.mxu0 0
    %2188 = vmatprep.subr.bf16.mxu0 0
    %2189 = vmatpush1.bf16.msra.mxu0 0
    %2190 = vmatprep.subr.bf16.mxu0 0
    %2191 = vmatpush1.bf16.msra.mxu0 0
    %2192 = vmatprep.subr.bf16.mxu0 0
    %2193 = vmatpush1.bf16.msra.mxu0 0
    %2194 = vmatprep.subr.bf16.mxu0 0
    %2195 = vmatpush1.bf16.msra.mxu0 0
    %2196 = vmatprep.mubr.bf16.mxu0 0
    %2197 = vmatmul.mubr.bf16.gmra.mrb[0].mxu0 %v1506
    %v2198 = vpop.f32.mrb[0].mxu0
    %v2199 = vadd.f32 %v556, %v2198
    %v2200 = vpop.f32.mrb[0].mxu0
    %v2201 = vadd.f32 %v560, %v2200
    %v2202 = vpop.f32.mrb[0].mxu0
    %v2203 = vpop.f32.mrb[0].mxu0
    %2204 = vdwg.mxu0
    %2205 = vmatprep.subr.bf16.mxu0 %v1252
    %2206 = vmatpush1.bf16.msra.mxu0 %v1251
    %2207 = vmatprep.subr.bf16.mxu0 %v1324
    %2208 = vmatpush1.bf16.msra.mxu0 %v1323
    %2209 = vmatprep.subr.bf16.mxu0 0
    %2210 = vmatpush1.bf16.msra.mxu0 0
    %2211 = vmatprep.subr.bf16.mxu0 0
    %2212 = vmatpush1.bf16.msra.mxu0 0
    %2213 = vmatprep.subr.bf16.mxu0 0
    %2214 = vmatpush1.bf16.msra.mxu0 0
    %2215 = vmatprep.subr.bf16.mxu0 0
    %2216 = vmatpush1.bf16.msra.mxu0 0
    %2217 = vmatprep.subr.bf16.mxu0 0
    %2218 = vmatpush1.bf16.msra.mxu0 0
    %2219 = vmatprep.subr.bf16.mxu0 0
    %2220 = vmatpush1.bf16.msra.mxu0 0
    %2221 = vmatprep.subr.bf16.mxu0 0
    %2222 = vmatpush1.bf16.msra.mxu0 0
    %2223 = vmatprep.subr.bf16.mxu0 0
    %2224 = vmatpush1.bf16.msra.mxu0 0
    %2225 = vmatprep.subr.bf16.mxu0 0
    %2226 = vmatpush1.bf16.msra.mxu0 0
    %2227 = vmatprep.subr.bf16.mxu0 0
    %2228 = vmatpush1.bf16.msra.mxu0 0
    %2229 = vmatprep.subr.bf16.mxu0 0
    %2230 = vmatpush1.bf16.msra.mxu0 0
    %2231 = vmatprep.subr.bf16.mxu0 0
    %2232 = vmatpush1.bf16.msra.mxu0 0
    %2233 = vmatprep.subr.bf16.mxu0 0
    %2234 = vmatpush1.bf16.msra.mxu0 0
    %2235 = vmatprep.subr.bf16.mxu0 0
    %2236 = vmatpush1.bf16.msra.mxu0 0
    %2237 = vmatprep.mubr.bf16.mxu0 0
    %2238 = vmatmul.mubr.bf16.gmra.mrb[0].mxu0 %v1506
    %v2239 = vpop.f32.mrb[0].mxu0
    %v2240 = vadd.f32 %v564, %v2239
    %v2241 = vpop.f32.mrb[0].mxu0
    %v2242 = vadd.f32 %v568, %v2241
    %v2243 = vpop.f32.mrb[0].mxu0
    %v2244 = vpop.f32.mrb[0].mxu0
    %2245 = vdwg.mxu0
    %2246 = vmatprep.subr.bf16.mxu0 %v1254
    %2247 = vmatpush1.bf16.msra.mxu0 %v1253
    %2248 = vmatprep.subr.bf16.mxu0 %v1326
    %2249 = vmatpush1.bf16.msra.mxu0 %v1325
    %2250 = vmatprep.subr.bf16.mxu0 0
    %2251 = vmatpush1.bf16.msra.mxu0 0
    %2252 = vmatprep.subr.bf16.mxu0 0
    %2253 = vmatpush1.bf16.msra.mxu0 0
    %2254 = vmatprep.subr.bf16.mxu0 0
    %2255 = vmatpush1.bf16.msra.mxu0 0
    %2256 = vmatprep.subr.bf16.mxu0 0
    %2257 = vmatpush1.bf16.msra.mxu0 0
    %2258 = vmatprep.subr.bf16.mxu0 0
    %2259 = vmatpush1.bf16.msra.mxu0 0
    %2260 = vmatprep.subr.bf16.mxu0 0
    %2261 = vmatpush1.bf16.msra.mxu0 0
    %2262 = vmatprep.subr.bf16.mxu0 0
    %2263 = vmatpush1.bf16.msra.mxu0 0
    %2264 = vmatprep.subr.bf16.mxu0 0
    %2265 = vmatpush1.bf16.msra.mxu0 0
    %2266 = vmatprep.subr.bf16.mxu0 0
    %2267 = vmatpush1.bf16.msra.mxu0 0
    %2268 = vmatprep.subr.bf16.mxu0 0
    %2269 = vmatpush1.bf16.msra.mxu0 0
    %2270 = vmatprep.subr.bf16.mxu0 0
    %2271 = vmatpush1.bf16.msra.mxu0 0
    %2272 = vmatprep.subr.bf16.mxu0 0
    %2273 = vmatpush1.bf16.msra.mxu0 0
    %2274 = vmatprep.subr.bf16.mxu0 0
    %2275 = vmatpush1.bf16.msra.mxu0 0
    %2276 = vmatprep.subr.bf16.mxu0 0
    %2277 = vmatpush1.bf16.msra.mxu0 0
    %2278 = vmatprep.mubr.bf16.mxu0 0
    %2279 = vmatmul.mubr.bf16.gmra.mrb[0].mxu0 %v1506
    %v2280 = vpop.f32.mrb[0].mxu0
    %v2281 = vadd.f32 %v572, %v2280
    %v2282 = vpop.f32.mrb[0].mxu0
    %v2283 = vadd.f32 %v576, %v2282
    %v2284 = vpop.f32.mrb[0].mxu0
    %v2285 = vpop.f32.mrb[0].mxu0
    %2286 = vdwg.mxu0
    %2287 = vmatprep.subr.bf16.mxu0 %v1256
    %2288 = vmatpush1.bf16.msra.mxu0 %v1255
    %2289 = vmatprep.subr.bf16.mxu0 %v1328
    %2290 = vmatpush1.bf16.msra.mxu0 %v1327
    %2291 = vmatprep.subr.bf16.mxu0 0
    %2292 = vmatpush1.bf16.msra.mxu0 0
    %2293 = vmatprep.subr.bf16.mxu0 0
    %2294 = vmatpush1.bf16.msra.mxu0 0
    %2295 = vmatprep.subr.bf16.mxu0 0
    %2296 = vmatpush1.bf16.msra.mxu0 0
    %2297 = vmatprep.subr.bf16.mxu0 0
    %2298 = vmatpush1.bf16.msra.mxu0 0
    %2299 = vmatprep.subr.bf16.mxu0 0
    %2300 = vmatpush1.bf16.msra.mxu0 0
    %2301 = vmatprep.subr.bf16.mxu0 0
    %2302 = vmatpush1.bf16.msra.mxu0 0
    %2303 = vmatprep.subr.bf16.mxu0 0
    %2304 = vmatpush1.bf16.msra.mxu0 0
    %2305 = vmatprep.subr.bf16.mxu0 0
    %2306 = vmatpush1.bf16.msra.mxu0 0
    %2307 = vmatprep.subr.bf16.mxu0 0
    %2308 = vmatpush1.bf16.msra.mxu0 0
    %2309 = vmatprep.subr.bf16.mxu0 0
    %2310 = vmatpush1.bf16.msra.mxu0 0
    %2311 = vmatprep.subr.bf16.mxu0 0
    %2312 = vmatpush1.bf16.msra.mxu0 0
    %2313 = vmatprep.subr.bf16.mxu0 0
    %2314 = vmatpush1.bf16.msra.mxu0 0
    %2315 = vmatprep.subr.bf16.mxu0 0
    %2316 = vmatpush1.bf16.msra.mxu0 0
    %2317 = vmatprep.subr.bf16.mxu0 0
    %2318 = vmatpush1.bf16.msra.mxu0 0
    %2319 = vmatprep.mubr.bf16.mxu0 0
    %2320 = vmatmul.mubr.bf16.gmra.mrb[0].mxu0 %v1506
    %v2321 = vpop.f32.mrb[0].mxu0
    %v2322 = vadd.f32 %v580, %v2321
    %v2323 = vpop.f32.mrb[0].mxu0
    %v2324 = vadd.f32 %v584, %v2323
    %v2325 = vpop.f32.mrb[0].mxu0
    %v2326 = vpop.f32.mrb[0].mxu0
    %2327 = vdwg.mxu0
    %2328 = vmatprep.subr.bf16.mxu0 %v1258
    %2329 = vmatpush1.bf16.msra.mxu0 %v1257
    %2330 = vmatprep.subr.bf16.mxu0 %v1330
    %2331 = vmatpush1.bf16.msra.mxu0 %v1329
    %2332 = vmatprep.subr.bf16.mxu0 0
    %2333 = vmatpush1.bf16.msra.mxu0 0
    %2334 = vmatprep.subr.bf16.mxu0 0
    %2335 = vmatpush1.bf16.msra.mxu0 0
    %2336 = vmatprep.subr.bf16.mxu0 0
    %2337 = vmatpush1.bf16.msra.mxu0 0
    %2338 = vmatprep.subr.bf16.mxu0 0
    %2339 = vmatpush1.bf16.msra.mxu0 0
    %2340 = vmatprep.subr.bf16.mxu0 0
    %2341 = vmatpush1.bf16.msra.mxu0 0
    %2342 = vmatprep.subr.bf16.mxu0 0
    %2343 = vmatpush1.bf16.msra.mxu0 0
    %2344 = vmatprep.subr.bf16.mxu0 0
    %2345 = vmatpush1.bf16.msra.mxu0 0
    %2346 = vmatprep.subr.bf16.mxu0 0
    %2347 = vmatpush1.bf16.msra.mxu0 0
    %2348 = vmatprep.subr.bf16.mxu0 0
    %2349 = vmatpush1.bf16.msra.mxu0 0
    %2350 = vmatprep.subr.bf16.mxu0 0
    %2351 = vmatpush1.bf16.msra.mxu0 0
    %2352 = vmatprep.subr.bf16.mxu0 0
    %2353 = vmatpush1.bf16.msra.mxu0 0
    %2354 = vmatprep.subr.bf16.mxu0 0
    %2355 = vmatpush1.bf16.msra.mxu0 0
    %2356 = vmatprep.subr.bf16.mxu0 0
    %2357 = vmatpush1.bf16.msra.mxu0 0
    %2358 = vmatprep.subr.bf16.mxu0 0
    %2359 = vmatpush1.bf16.msra.mxu0 0
    %2360 = vmatprep.mubr.bf16.mxu0 0
    %2361 = vmatmul.mubr.bf16.gmra.mrb[0].mxu0 %v1506
    %v2362 = vpop.f32.mrb[0].mxu0
    %v2363 = vadd.f32 %v588, %v2362
    %v2364 = vpop.f32.mrb[0].mxu0
    %v2365 = vadd.f32 %v592, %v2364
    %v2366 = vpop.f32.mrb[0].mxu0
    %v2367 = vpop.f32.mrb[0].mxu0
    %2368 = vdwg.mxu0
    %2369 = vmatprep.subr.bf16.mxu0 %v1260
    %2370 = vmatpush1.bf16.msra.mxu0 %v1259
    %2371 = vmatprep.subr.bf16.mxu0 %v1332
    %2372 = vmatpush1.bf16.msra.mxu0 %v1331
    %2373 = vmatprep.subr.bf16.mxu0 0
    %2374 = vmatpush1.bf16.msra.mxu0 0
    %2375 = vmatprep.subr.bf16.mxu0 0
    %2376 = vmatpush1.bf16.msra.mxu0 0
    %2377 = vmatprep.subr.bf16.mxu0 0
    %2378 = vmatpush1.bf16.msra.mxu0 0
    %2379 = vmatprep.subr.bf16.mxu0 0
    %2380 = vmatpush1.bf16.msra.mxu0 0
    %2381 = vmatprep.subr.bf16.mxu0 0
    %2382 = vmatpush1.bf16.msra.mxu0 0
    %2383 = vmatprep.subr.bf16.mxu0 0
    %2384 = vmatpush1.bf16.msra.mxu0 0
    %2385 = vmatprep.subr.bf16.mxu0 0
    %2386 = vmatpush1.bf16.msra.mxu0 0
    %2387 = vmatprep.subr.bf16.mxu0 0
    %2388 = vmatpush1.bf16.msra.mxu0 0
    %2389 = vmatprep.subr.bf16.mxu0 0
    %2390 = vmatpush1.bf16.msra.mxu0 0
    %2391 = vmatprep.subr.bf16.mxu0 0
    %2392 = vmatpush1.bf16.msra.mxu0 0
    %2393 = vmatprep.subr.bf16.mxu0 0
    %2394 = vmatpush1.bf16.msra.mxu0 0
    %2395 = vmatprep.subr.bf16.mxu0 0
    %2396 = vmatpush1.bf16.msra.mxu0 0
    %2397 = vmatprep.subr.bf16.mxu0 0
    %2398 = vmatpush1.bf16.msra.mxu0 0
    %2399 = vmatprep.subr.bf16.mxu0 0
    %2400 = vmatpush1.bf16.msra.mxu0 0
    %2401 = vmatprep.mubr.bf16.mxu0 0
    %2402 = vmatmul.mubr.bf16.gmra.mrb[0].mxu0 %v1506
    %v2403 = vpop.f32.mrb[0].mxu0
    %v2404 = vadd.f32 %v596, %v2403
    %v2405 = vpop.f32.mrb[0].mxu0
    %v2406 = vadd.f32 %v600, %v2405
    %v2407 = vpop.f32.mrb[0].mxu0
    %v2408 = vpop.f32.mrb[0].mxu0
    %2409 = vdwg.mxu0
    %2410 = vmatprep.subr.bf16.mxu0 %v1262
    %2411 = vmatpush1.bf16.msra.mxu0 %v1261
    %2412 = vmatprep.subr.bf16.mxu0 %v1334
    %2413 = vmatpush1.bf16.msra.mxu0 %v1333
    %2414 = vmatprep.subr.bf16.mxu0 0
    %2415 = vmatpush1.bf16.msra.mxu0 0
    %2416 = vmatprep.subr.bf16.mxu0 0
    %2417 = vmatpush1.bf16.msra.mxu0 0
    %2418 = vmatprep.subr.bf16.mxu0 0
    %2419 = vmatpush1.bf16.msra.mxu0 0
    %2420 = vmatprep.subr.bf16.mxu0 0
    %2421 = vmatpush1.bf16.msra.mxu0 0
    %2422 = vmatprep.subr.bf16.mxu0 0
    %2423 = vmatpush1.bf16.msra.mxu0 0
    %2424 = vmatprep.subr.bf16.mxu0 0
    %2425 = vmatpush1.bf16.msra.mxu0 0
    %2426 = vmatprep.subr.bf16.mxu0 0
    %2427 = vmatpush1.bf16.msra.mxu0 0
    %2428 = vmatprep.subr.bf16.mxu0 0
    %2429 = vmatpush1.bf16.msra.mxu0 0
    %2430 = vmatprep.subr.bf16.mxu0 0
    %2431 = vmatpush1.bf16.msra.mxu0 0
    %2432 = vmatprep.subr.bf16.mxu0 0
    %2433 = vmatpush1.bf16.msra.mxu0 0
    %2434 = vmatprep.subr.bf16.mxu0 0
    %2435 = vmatpush1.bf16.msra.mxu0 0
    %2436 = vmatprep.subr.bf16.mxu0 0
    %2437 = vmatpush1.bf16.msra.mxu0 0
    %2438 = vmatprep.subr.bf16.mxu0 0
    %2439 = vmatpush1.bf16.msra.mxu0 0
    %2440 = vmatprep.subr.bf16.mxu0 0
    %2441 = vmatpush1.bf16.msra.mxu0 0
    %2442 = vmatprep.mubr.bf16.mxu0 0
    %2443 = vmatmul.mubr.bf16.gmra.mrb[0].mxu0 %v1506
    %v2444 = vpop.f32.mrb[0].mxu0
    %v2445 = vadd.f32 %v604, %v2444
    %v2446 = vpop.f32.mrb[0].mxu0
    %v2447 = vadd.f32 %v608, %v2446
    %v2448 = vpop.f32.mrb[0].mxu0
    %v2449 = vpop.f32.mrb[0].mxu0
    %2450 = vdwg.mxu0
    %2451 = vmatprep.subr.bf16.mxu0 %v1264
    %2452 = vmatpush1.bf16.msra.mxu0 %v1263
    %2453 = vmatprep.subr.bf16.mxu0 %v1336
    %2454 = vmatpush1.bf16.msra.mxu0 %v1335
    %2455 = vmatprep.subr.bf16.mxu0 0
    %2456 = vmatpush1.bf16.msra.mxu0 0
    %2457 = vmatprep.subr.bf16.mxu0 0
    %2458 = vmatpush1.bf16.msra.mxu0 0
    %2459 = vmatprep.subr.bf16.mxu0 0
    %2460 = vmatpush1.bf16.msra.mxu0 0
    %2461 = vmatprep.subr.bf16.mxu0 0
    %2462 = vmatpush1.bf16.msra.mxu0 0
    %2463 = vmatprep.subr.bf16.mxu0 0
    %2464 = vmatpush1.bf16.msra.mxu0 0
    %2465 = vmatprep.subr.bf16.mxu0 0
    %2466 = vmatpush1.bf16.msra.mxu0 0
    %2467 = vmatprep.subr.bf16.mxu0 0
    %2468 = vmatpush1.bf16.msra.mxu0 0
    %2469 = vmatprep.subr.bf16.mxu0 0
    %2470 = vmatpush1.bf16.msra.mxu0 0
    %2471 = vmatprep.subr.bf16.mxu0 0
    %2472 = vmatpush1.bf16.msra.mxu0 0
    %2473 = vmatprep.subr.bf16.mxu0 0
    %2474 = vmatpush1.bf16.msra.mxu0 0
    %2475 = vmatprep.subr.bf16.mxu0 0
    %2476 = vmatpush1.bf16.msra.mxu0 0
    %2477 = vmatprep.subr.bf16.mxu0 0
    %2478 = vmatpush1.bf16.msra.mxu0 0
    %2479 = vmatprep.subr.bf16.mxu0 0
    %2480 = vmatpush1.bf16.msra.mxu0 0
    %2481 = vmatprep.subr.bf16.mxu0 0
    %2482 = vmatpush1.bf16.msra.mxu0 0
    %2483 = vmatprep.mubr.bf16.mxu0 0
    %2484 = vmatmul.mubr.bf16.gmra.mrb[0].mxu0 %v1506
    %v2485 = vpop.f32.mrb[0].mxu0
    %v2486 = vadd.f32 %v612, %v2485
    %v2487 = vpop.f32.mrb[0].mxu0
    %v2488 = vadd.f32 %v616, %v2487
    %v2489 = vpop.f32.mrb[0].mxu0
    %v2490 = vpop.f32.mrb[0].mxu0
    %2491 = vdwg.mxu0
    %2492 = vmatprep.subr.bf16.mxu0 %v1266
    %2493 = vmatpush1.bf16.msra.mxu0 %v1265
    %2494 = vmatprep.subr.bf16.mxu0 %v1338
    %2495 = vmatpush1.bf16.msra.mxu0 %v1337
    %2496 = vmatprep.subr.bf16.mxu0 0
    %2497 = vmatpush1.bf16.msra.mxu0 0
    %2498 = vmatprep.subr.bf16.mxu0 0
    %2499 = vmatpush1.bf16.msra.mxu0 0
    %2500 = vmatprep.subr.bf16.mxu0 0
    %2501 = vmatpush1.bf16.msra.mxu0 0
    %2502 = vmatprep.subr.bf16.mxu0 0
    %2503 = vmatpush1.bf16.msra.mxu0 0
    %2504 = vmatprep.subr.bf16.mxu0 0
    %2505 = vmatpush1.bf16.msra.mxu0 0
    %2506 = vmatprep.subr.bf16.mxu0 0
    %2507 = vmatpush1.bf16.msra.mxu0 0
    %2508 = vmatprep.subr.bf16.mxu0 0
    %2509 = vmatpush1.bf16.msra.mxu0 0
    %2510 = vmatprep.subr.bf16.mxu0 0
    %2511 = vmatpush1.bf16.msra.mxu0 0
    %2512 = vmatprep.subr.bf16.mxu0 0
    %2513 = vmatpush1.bf16.msra.mxu0 0
    %2514 = vmatprep.subr.bf16.mxu0 0
    %2515 = vmatpush1.bf16.msra.mxu0 0
    %2516 = vmatprep.subr.bf16.mxu0 0
    %2517 = vmatpush1.bf16.msra.mxu0 0
    %2518 = vmatprep.subr.bf16.mxu0 0
    %2519 = vmatpush1.bf16.msra.mxu0 0
    %2520 = vmatprep.subr.bf16.mxu0 0
    %2521 = vmatpush1.bf16.msra.mxu0 0
    %2522 = vmatprep.subr.bf16.mxu0 0
    %2523 = vmatpush1.bf16.msra.mxu0 0
    %2524 = vmatprep.mubr.bf16.mxu0 0
    %2525 = vmatmul.mubr.bf16.gmra.mrb[0].mxu0 %v1506
    %v2526 = vpop.f32.mrb[0].mxu0
    %v2527 = vadd.f32 %v620, %v2526
    %v2528 = vpop.f32.mrb[0].mxu0
    %v2529 = vadd.f32 %v624, %v2528
    %v2530 = vpop.f32.mrb[0].mxu0
    %v2531 = vpop.f32.mrb[0].mxu0
    %2532 = vdwg.mxu0
    %2533 = vmatprep.subr.bf16.mxu0 %v1268
    %2534 = vmatpush1.bf16.msra.mxu0 %v1267
    %2535 = vmatprep.subr.bf16.mxu0 %v1340
    %2536 = vmatpush1.bf16.msra.mxu0 %v1339
    %2537 = vmatprep.subr.bf16.mxu0 0
    %2538 = vmatpush1.bf16.msra.mxu0 0
    %2539 = vmatprep.subr.bf16.mxu0 0
    %2540 = vmatpush1.bf16.msra.mxu0 0
    %2541 = vmatprep.subr.bf16.mxu0 0
    %2542 = vmatpush1.bf16.msra.mxu0 0
    %2543 = vmatprep.subr.bf16.mxu0 0
    %2544 = vmatpush1.bf16.msra.mxu0 0
    %2545 = vmatprep.subr.bf16.mxu0 0
    %2546 = vmatpush1.bf16.msra.mxu0 0
    %2547 = vmatprep.subr.bf16.mxu0 0
    %2548 = vmatpush1.bf16.msra.mxu0 0
    %2549 = vmatprep.subr.bf16.mxu0 0
    %2550 = vmatpush1.bf16.msra.mxu0 0
    %2551 = vmatprep.subr.bf16.mxu0 0
    %2552 = vmatpush1.bf16.msra.mxu0 0
    %2553 = vmatprep.subr.bf16.mxu0 0
    %2554 = vmatpush1.bf16.msra.mxu0 0
    %2555 = vmatprep.subr.bf16.mxu0 0
    %2556 = vmatpush1.bf16.msra.mxu0 0
    %2557 = vmatprep.subr.bf16.mxu0 0
    %2558 = vmatpush1.bf16.msra.mxu0 0
    %2559 = vmatprep.subr.bf16.mxu0 0
    %2560 = vmatpush1.bf16.msra.mxu0 0
    %2561 = vmatprep.subr.bf16.mxu0 0
    %2562 = vmatpush1.bf16.msra.mxu0 0
    %2563 = vmatprep.subr.bf16.mxu0 0
    %2564 = vmatpush1.bf16.msra.mxu0 0
    %2565 = vmatprep.mubr.bf16.mxu0 0
    %2566 = vmatmul.mubr.bf16.gmra.mrb[0].mxu0 %v1506
    %v2567 = vpop.f32.mrb[0].mxu0
    %v2568 = vadd.f32 %v628, %v2567
    %v2569 = vpop.f32.mrb[0].mxu0
    %v2570 = vadd.f32 %v632, %v2569
    %v2571 = vpop.f32.mrb[0].mxu0
    %v2572 = vpop.f32.mrb[0].mxu0
    %2573 = vdwg.mxu0
    %2574 = vmatprep.subr.bf16.mxu0 %v1270
    %2575 = vmatpush1.bf16.msra.mxu0 %v1269
    %2576 = vmatprep.subr.bf16.mxu0 %v1342
    %2577 = vmatpush1.bf16.msra.mxu0 %v1341
    %2578 = vmatprep.subr.bf16.mxu0 0
    %2579 = vmatpush1.bf16.msra.mxu0 0
    %2580 = vmatprep.subr.bf16.mxu0 0
    %2581 = vmatpush1.bf16.msra.mxu0 0
    %2582 = vmatprep.subr.bf16.mxu0 0
    %2583 = vmatpush1.bf16.msra.mxu0 0
    %2584 = vmatprep.subr.bf16.mxu0 0
    %2585 = vmatpush1.bf16.msra.mxu0 0
    %2586 = vmatprep.subr.bf16.mxu0 0
    %2587 = vmatpush1.bf16.msra.mxu0 0
    %2588 = vmatprep.subr.bf16.mxu0 0
    %2589 = vmatpush1.bf16.msra.mxu0 0
    %2590 = vmatprep.subr.bf16.mxu0 0
    %2591 = vmatpush1.bf16.msra.mxu0 0
    %2592 = vmatprep.subr.bf16.mxu0 0
    %2593 = vmatpush1.bf16.msra.mxu0 0
    %2594 = vmatprep.subr.bf16.mxu0 0
    %2595 = vmatpush1.bf16.msra.mxu0 0
    %2596 = vmatprep.subr.bf16.mxu0 0
    %2597 = vmatpush1.bf16.msra.mxu0 0
    %2598 = vmatprep.subr.bf16.mxu0 0
    %2599 = vmatpush1.bf16.msra.mxu0 0
    %2600 = vmatprep.subr.bf16.mxu0 0
    %2601 = vmatpush1.bf16.msra.mxu0 0
    %2602 = vmatprep.subr.bf16.mxu0 0
    %2603 = vmatpush1.bf16.msra.mxu0 0
    %2604 = vmatprep.subr.bf16.mxu0 0
    %2605 = vmatpush1.bf16.msra.mxu0 0
    %2606 = vmatprep.mubr.bf16.mxu0 0
    %2607 = vmatmul.mubr.bf16.gmra.mrb[0].mxu0 %v1506
    %v2608 = vpop.f32.mrb[0].mxu0
    %v2609 = vadd.f32 %v636, %v2608
    %v2610 = vpop.f32.mrb[0].mxu0
    %v2611 = vadd.f32 %v640, %v2610
    %v2612 = vpop.f32.mrb[0].mxu0
    %v2613 = vpop.f32.mrb[0].mxu0
    %2614 = vdwg.mxu0
    %2615 = vmatprep.subr.bf16.mxu0 %v1272
    %2616 = vmatpush1.bf16.msra.mxu0 %v1271
    %2617 = vmatprep.subr.bf16.mxu0 %v1344
    %2618 = vmatpush1.bf16.msra.mxu0 %v1343
    %2619 = vmatprep.subr.bf16.mxu0 0
    %2620 = vmatpush1.bf16.msra.mxu0 0
    %2621 = vmatprep.subr.bf16.mxu0 0
    %2622 = vmatpush1.bf16.msra.mxu0 0
    %2623 = vmatprep.subr.bf16.mxu0 0
    %2624 = vmatpush1.bf16.msra.mxu0 0
    %2625 = vmatprep.subr.bf16.mxu0 0
    %2626 = vmatpush1.bf16.msra.mxu0 0
    %2627 = vmatprep.subr.bf16.mxu0 0
    %2628 = vmatpush1.bf16.msra.mxu0 0
    %2629 = vmatprep.subr.bf16.mxu0 0
    %2630 = vmatpush1.bf16.msra.mxu0 0
    %2631 = vmatprep.subr.bf16.mxu0 0
    %2632 = vmatpush1.bf16.msra.mxu0 0
    %2633 = vmatprep.subr.bf16.mxu0 0
    %2634 = vmatpush1.bf16.msra.mxu0 0
    %2635 = vmatprep.subr.bf16.mxu0 0
    %2636 = vmatpush1.bf16.msra.mxu0 0
    %2637 = vmatprep.subr.bf16.mxu0 0
    %2638 = vmatpush1.bf16.msra.mxu0 0
    %2639 = vmatprep.subr.bf16.mxu0 0
    %2640 = vmatpush1.bf16.msra.mxu0 0
    %2641 = vmatprep.subr.bf16.mxu0 0
    %2642 = vmatpush1.bf16.msra.mxu0 0
    %2643 = vmatprep.subr.bf16.mxu0 0
    %2644 = vmatpush1.bf16.msra.mxu0 0
    %2645 = vmatprep.subr.bf16.mxu0 0
    %2646 = vmatpush1.bf16.msra.mxu0 0
    %2647 = vmatprep.mubr.bf16.mxu0 0
    %2648 = vmatmul.mubr.bf16.gmra.mrb[0].mxu0 %v1506
    %v2649 = vpop.f32.mrb[0].mxu0
    %v2650 = vadd.f32 %v644, %v2649
    %v2651 = vpop.f32.mrb[0].mxu0
    %v2652 = vadd.f32 %v648, %v2651
    %v2653 = vpop.f32.mrb[0].mxu0
    %v2654 = vpop.f32.mrb[0].mxu0
    %2655 = vdwg.mxu0
    %2656 = vmatprep.subr.bf16.mxu0 %v1274
    %2657 = vmatpush1.bf16.msra.mxu0 %v1273
    %2658 = vmatprep.subr.bf16.mxu0 %v1346
    %2659 = vmatpush1.bf16.msra.mxu0 %v1345
    %2660 = vmatprep.subr.bf16.mxu0 0
    %2661 = vmatpush1.bf16.msra.mxu0 0
    %2662 = vmatprep.subr.bf16.mxu0 0
    %2663 = vmatpush1.bf16.msra.mxu0 0
    %2664 = vmatprep.subr.bf16.mxu0 0
    %2665 = vmatpush1.bf16.msra.mxu0 0
    %2666 = vmatprep.subr.bf16.mxu0 0
    %2667 = vmatpush1.bf16.msra.mxu0 0
    %2668 = vmatprep.subr.bf16.mxu0 0
    %2669 = vmatpush1.bf16.msra.mxu0 0
    %2670 = vmatprep.subr.bf16.mxu0 0
    %2671 = vmatpush1.bf16.msra.mxu0 0
    %2672 = vmatprep.subr.bf16.mxu0 0
    %2673 = vmatpush1.bf16.msra.mxu0 0
    %2674 = vmatprep.subr.bf16.mxu0 0
    %2675 = vmatpush1.bf16.msra.mxu0 0
    %2676 = vmatprep.subr.bf16.mxu0 0
    %2677 = vmatpush1.bf16.msra.mxu0 0
    %2678 = vmatprep.subr.bf16.mxu0 0
    %2679 = vmatpush1.bf16.msra.mxu0 0
    %2680 = vmatprep.subr.bf16.mxu0 0
    %2681 = vmatpush1.bf16.msra.mxu0 0
    %2682 = vmatprep.subr.bf16.mxu0 0
    %2683 = vmatpush1.bf16.msra.mxu0 0
    %2684 = vmatprep.subr.bf16.mxu0 0
    %2685 = vmatpush1.bf16.msra.mxu0 0
    %2686 = vmatprep.subr.bf16.mxu0 0
    %2687 = vmatpush1.bf16.msra.mxu0 0
    %2688 = vmatprep.mubr.bf16.mxu0 0
    %2689 = vmatmul.mubr.bf16.gmra.mrb[0].mxu0 %v1506
    %v2690 = vpop.f32.mrb[0].mxu0
    %v2691 = vadd.f32 %v652, %v2690
    %v2692 = vpop.f32.mrb[0].mxu0
    %v2693 = vadd.f32 %v656, %v2692
    %v2694 = vpop.f32.mrb[0].mxu0
    %v2695 = vpop.f32.mrb[0].mxu0
    %2696 = vdwg.mxu0
    %2697 = vmatprep.subr.bf16.mxu0 %v1276
    %2698 = vmatpush1.bf16.msra.mxu0 %v1275
    %2699 = vmatprep.subr.bf16.mxu0 %v1348
    %2700 = vmatpush1.bf16.msra.mxu0 %v1347
    %2701 = vmatprep.subr.bf16.mxu0 0
    %2702 = vmatpush1.bf16.msra.mxu0 0
    %2703 = vmatprep.subr.bf16.mxu0 0
    %2704 = vmatpush1.bf16.msra.mxu0 0
    %2705 = vmatprep.subr.bf16.mxu0 0
    %2706 = vmatpush1.bf16.msra.mxu0 0
    %2707 = vmatprep.subr.bf16.mxu0 0
    %2708 = vmatpush1.bf16.msra.mxu0 0
    %2709 = vmatprep.subr.bf16.mxu0 0
    %2710 = vmatpush1.bf16.msra.mxu0 0
    %2711 = vmatprep.subr.bf16.mxu0 0
    %2712 = vmatpush1.bf16.msra.mxu0 0
    %2713 = vmatprep.subr.bf16.mxu0 0
    %2714 = vmatpush1.bf16.msra.mxu0 0
    %2715 = vmatprep.subr.bf16.mxu0 0
    %2716 = vmatpush1.bf16.msra.mxu0 0
    %2717 = vmatprep.subr.bf16.mxu0 0
    %2718 = vmatpush1.bf16.msra.mxu0 0
    %2719 = vmatprep.subr.bf16.mxu0 0
    %2720 = vmatpush1.bf16.msra.mxu0 0
    %2721 = vmatprep.subr.bf16.mxu0 0
    %2722 = vmatpush1.bf16.msra.mxu0 0
    %2723 = vmatprep.subr.bf16.mxu0 0
    %2724 = vmatpush1.bf16.msra.mxu0 0
    %2725 = vmatprep.subr.bf16.mxu0 0
    %2726 = vmatpush1.bf16.msra.mxu0 0
    %2727 = vmatprep.subr.bf16.mxu0 0
    %2728 = vmatpush1.bf16.msra.mxu0 0
    %2729 = vmatprep.mubr.bf16.mxu0 0
    %2730 = vmatmul.mubr.bf16.gmra.mrb[0].mxu0 %v1506
    %v2731 = vpop.f32.mrb[0].mxu0
    %v2732 = vadd.f32 %v660, %v2731
    %v2733 = vpop.f32.mrb[0].mxu0
    %v2734 = vadd.f32 %v664, %v2733
    %v2735 = vpop.f32.mrb[0].mxu0
    %v2736 = vpop.f32.mrb[0].mxu0
    %2737 = vdwg.mxu0
    %2738 = vmatprep.subr.bf16.mxu0 %v1278
    %2739 = vmatpush1.bf16.msra.mxu0 %v1277
    %2740 = vmatprep.subr.bf16.mxu0 %v1350
    %2741 = vmatpush1.bf16.msra.mxu0 %v1349
    %2742 = vmatprep.subr.bf16.mxu0 0
    %2743 = vmatpush1.bf16.msra.mxu0 0
    %2744 = vmatprep.subr.bf16.mxu0 0
    %2745 = vmatpush1.bf16.msra.mxu0 0
    %2746 = vmatprep.subr.bf16.mxu0 0
    %2747 = vmatpush1.bf16.msra.mxu0 0
    %2748 = vmatprep.subr.bf16.mxu0 0
    %2749 = vmatpush1.bf16.msra.mxu0 0
    %2750 = vmatprep.subr.bf16.mxu0 0
    %2751 = vmatpush1.bf16.msra.mxu0 0
    %2752 = vmatprep.subr.bf16.mxu0 0
    %2753 = vmatpush1.bf16.msra.mxu0 0
    %2754 = vmatprep.subr.bf16.mxu0 0
    %2755 = vmatpush1.bf16.msra.mxu0 0
    %2756 = vmatprep.subr.bf16.mxu0 0
    %2757 = vmatpush1.bf16.msra.mxu0 0
    %2758 = vmatprep.subr.bf16.mxu0 0
    %2759 = vmatpush1.bf16.msra.mxu0 0
    %2760 = vmatprep.subr.bf16.mxu0 0
    %2761 = vmatpush1.bf16.msra.mxu0 0
    %2762 = vmatprep.subr.bf16.mxu0 0
    %2763 = vmatpush1.bf16.msra.mxu0 0
    %2764 = vmatprep.subr.bf16.mxu0 0
    %2765 = vmatpush1.bf16.msra.mxu0 0
    %2766 = vmatprep.subr.bf16.mxu0 0
    %2767 = vmatpush1.bf16.msra.mxu0 0
    %2768 = vmatprep.subr.bf16.mxu0 0
    %2769 = vmatpush1.bf16.msra.mxu0 0
    %2770 = vmatprep.mubr.bf16.mxu0 0
    %2771 = vmatmul.mubr.bf16.gmra.mrb[0].mxu0 %v1506
    %v2772 = vpop.f32.mrb[0].mxu0
    %v2773 = vadd.f32 %v668, %v2772
    %v2774 = vpop.f32.mrb[0].mxu0
    %v2775 = vadd.f32 %v672, %v2774
    %v2776 = vpop.f32.mrb[0].mxu0
    %v2777 = vpop.f32.mrb[0].mxu0
    %2778 = vdwg.mxu0
    %2779 = vmatprep.subr.bf16.mxu0 %v1280
    %2780 = vmatpush1.bf16.msra.mxu0 %v1279
    %2781 = vmatprep.subr.bf16.mxu0 %v1352
    %2782 = vmatpush1.bf16.msra.mxu0 %v1351
    %2783 = vmatprep.subr.bf16.mxu0 0
    %2784 = vmatpush1.bf16.msra.mxu0 0
    %2785 = vmatprep.subr.bf16.mxu0 0
    %2786 = vmatpush1.bf16.msra.mxu0 0
    %2787 = vmatprep.subr.bf16.mxu0 0
    %2788 = vmatpush1.bf16.msra.mxu0 0
    %2789 = vmatprep.subr.bf16.mxu0 0
    %2790 = vmatpush1.bf16.msra.mxu0 0
    %2791 = vmatprep.subr.bf16.mxu0 0
    %2792 = vmatpush1.bf16.msra.mxu0 0
    %2793 = vmatprep.subr.bf16.mxu0 0
    %2794 = vmatpush1.bf16.msra.mxu0 0
    %2795 = vmatprep.subr.bf16.mxu0 0
    %2796 = vmatpush1.bf16.msra.mxu0 0
    %2797 = vmatprep.subr.bf16.mxu0 0
    %2798 = vmatpush1.bf16.msra.mxu0 0
    %2799 = vmatprep.subr.bf16.mxu0 0
    %2800 = vmatpush1.bf16.msra.mxu0 0
    %2801 = vmatprep.subr.bf16.mxu0 0
    %2802 = vmatpush1.bf16.msra.mxu0 0
    %2803 = vmatprep.subr.bf16.mxu0 0
    %2804 = vmatpush1.bf16.msra.mxu0 0
    %2805 = vmatprep.subr.bf16.mxu0 0
    %2806 = vmatpush1.bf16.msra.mxu0 0
    %2807 = vmatprep.subr.bf16.mxu0 0
    %2808 = vmatpush1.bf16.msra.mxu0 0
    %2809 = vmatprep.subr.bf16.mxu0 0
    %2810 = vmatpush1.bf16.msra.mxu0 0
    %2811 = vmatprep.mubr.bf16.mxu0 0
    %2812 = vmatmul.mubr.bf16.gmra.mrb[0].mxu0 %v1506
    %v2813 = vpop.f32.mrb[0].mxu0
    %v2814 = vadd.f32 %v676, %v2813
    %v2815 = vpop.f32.mrb[0].mxu0
    %v2816 = vadd.f32 %v680, %v2815
    %v2817 = vpop.f32.mrb[0].mxu0
    %v2818 = vpop.f32.mrb[0].mxu0
    %2819 = vdwg.mxu0
    %2820 = vmatprep.subr.bf16.mxu0 %v1282
    %2821 = vmatpush1.bf16.msra.mxu0 %v1281
    %2822 = vmatprep.subr.bf16.mxu0 %v1354
    %2823 = vmatpush1.bf16.msra.mxu0 %v1353
    %2824 = vmatprep.subr.bf16.mxu0 0
    %2825 = vmatpush1.bf16.msra.mxu0 0
    %2826 = vmatprep.subr.bf16.mxu0 0
    %2827 = vmatpush1.bf16.msra.mxu0 0
    %2828 = vmatprep.subr.bf16.mxu0 0
    %2829 = vmatpush1.bf16.msra.mxu0 0
    %2830 = vmatprep.subr.bf16.mxu0 0
    %2831 = vmatpush1.bf16.msra.mxu0 0
    %2832 = vmatprep.subr.bf16.mxu0 0
    %2833 = vmatpush1.bf16.msra.mxu0 0
    %2834 = vmatprep.subr.bf16.mxu0 0
    %2835 = vmatpush1.bf16.msra.mxu0 0
    %2836 = vmatprep.subr.bf16.mxu0 0
    %2837 = vmatpush1.bf16.msra.mxu0 0
    %2838 = vmatprep.subr.bf16.mxu0 0
    %2839 = vmatpush1.bf16.msra.mxu0 0
    %2840 = vmatprep.subr.bf16.mxu0 0
    %2841 = vmatpush1.bf16.msra.mxu0 0
    %2842 = vmatprep.subr.bf16.mxu0 0
    %2843 = vmatpush1.bf16.msra.mxu0 0
    %2844 = vmatprep.subr.bf16.mxu0 0
    %2845 = vmatpush1.bf16.msra.mxu0 0
    %2846 = vmatprep.subr.bf16.mxu0 0
    %2847 = vmatpush1.bf16.msra.mxu0 0
    %2848 = vmatprep.subr.bf16.mxu0 0
    %2849 = vmatpush1.bf16.msra.mxu0 0
    %2850 = vmatprep.subr.bf16.mxu0 0
    %2851 = vmatpush1.bf16.msra.mxu0 0
    %2852 = vmatprep.mubr.bf16.mxu0 0
    %2853 = vmatmul.mubr.bf16.gmra.mrb[0].mxu0 %v1506
    %v2854 = vpop.f32.mrb[0].mxu0
    %v2855 = vadd.f32 %v684, %v2854
    %v2856 = vpop.f32.mrb[0].mxu0
    %v2857 = vadd.f32 %v688, %v2856
    %v2858 = vpop.f32.mrb[0].mxu0
    %v2859 = vpop.f32.mrb[0].mxu0
    %2860 = vdwg.mxu0
    %2861 = vmatprep.subr.bf16.mxu0 %v1284
    %2862 = vmatpush1.bf16.msra.mxu0 %v1283
    %2863 = vmatprep.subr.bf16.mxu0 %v1356
    %2864 = vmatpush1.bf16.msra.mxu0 %v1355
    %2865 = vmatprep.subr.bf16.mxu0 0
    %2866 = vmatpush1.bf16.msra.mxu0 0
    %2867 = vmatprep.subr.bf16.mxu0 0
    %2868 = vmatpush1.bf16.msra.mxu0 0
    %2869 = vmatprep.subr.bf16.mxu0 0
    %2870 = vmatpush1.bf16.msra.mxu0 0
    %2871 = vmatprep.subr.bf16.mxu0 0
    %2872 = vmatpush1.bf16.msra.mxu0 0
    %2873 = vmatprep.subr.bf16.mxu0 0
    %2874 = vmatpush1.bf16.msra.mxu0 0
    %2875 = vmatprep.subr.bf16.mxu0 0
    %2876 = vmatpush1.bf16.msra.mxu0 0
    %2877 = vmatprep.subr.bf16.mxu0 0
    %2878 = vmatpush1.bf16.msra.mxu0 0
    %2879 = vmatprep.subr.bf16.mxu0 0
    %2880 = vmatpush1.bf16.msra.mxu0 0
    %2881 = vmatprep.subr.bf16.mxu0 0
    %2882 = vmatpush1.bf16.msra.mxu0 0
    %2883 = vmatprep.subr.bf16.mxu0 0
    %2884 = vmatpush1.bf16.msra.mxu0 0
    %2885 = vmatprep.subr.bf16.mxu0 0
    %2886 = vmatpush1.bf16.msra.mxu0 0
    %2887 = vmatprep.subr.bf16.mxu0 0
    %2888 = vmatpush1.bf16.msra.mxu0 0
    %2889 = vmatprep.subr.bf16.mxu0 0
    %2890 = vmatpush1.bf16.msra.mxu0 0
    %2891 = vmatprep.subr.bf16.mxu0 0
    %2892 = vmatpush1.bf16.msra.mxu0 0
    %2893 = vmatprep.mubr.bf16.mxu0 0
    %2894 = vmatmul.mubr.bf16.gmra.mrb[0].mxu0 %v1506
    %v2895 = vpop.f32.mrb[0].mxu0
    %v2896 = vadd.f32 %v692, %v2895
    %v2897 = vpop.f32.mrb[0].mxu0
    %v2898 = vadd.f32 %v696, %v2897
    %v2899 = vpop.f32.mrb[0].mxu0
    %v2900 = vpop.f32.mrb[0].mxu0
    %2901 = vdwg.mxu0
    %2902 = vmatprep.subr.bf16.mxu0 %v1286
    %2903 = vmatpush1.bf16.msra.mxu0 %v1285
    %2904 = vmatprep.subr.bf16.mxu0 %v1358
    %2905 = vmatpush1.bf16.msra.mxu0 %v1357
    %2906 = vmatprep.subr.bf16.mxu0 0
    %2907 = vmatpush1.bf16.msra.mxu0 0
    %2908 = vmatprep.subr.bf16.mxu0 0
    %2909 = vmatpush1.bf16.msra.mxu0 0
    %2910 = vmatprep.subr.bf16.mxu0 0
    %2911 = vmatpush1.bf16.msra.mxu0 0
    %2912 = vmatprep.subr.bf16.mxu0 0
    %2913 = vmatpush1.bf16.msra.mxu0 0
    %2914 = vmatprep.subr.bf16.mxu0 0
    %2915 = vmatpush1.bf16.msra.mxu0 0
    %2916 = vmatprep.subr.bf16.mxu0 0
    %2917 = vmatpush1.bf16.msra.mxu0 0
    %2918 = vmatprep.subr.bf16.mxu0 0
    %2919 = vmatpush1.bf16.msra.mxu0 0
    %2920 = vmatprep.subr.bf16.mxu0 0
    %2921 = vmatpush1.bf16.msra.mxu0 0
    %2922 = vmatprep.subr.bf16.mxu0 0
    %2923 = vmatpush1.bf16.msra.mxu0 0
    %2924 = vmatprep.subr.bf16.mxu0 0
    %2925 = vmatpush1.bf16.msra.mxu0 0
    %2926 = vmatprep.subr.bf16.mxu0 0
    %2927 = vmatpush1.bf16.msra.mxu0 0
    %2928 = vmatprep.subr.bf16.mxu0 0
    %2929 = vmatpush1.bf16.msra.mxu0 0
    %2930 = vmatprep.subr.bf16.mxu0 0
    %2931 = vmatpush1.bf16.msra.mxu0 0
    %2932 = vmatprep.subr.bf16.mxu0 0
    %2933 = vmatpush1.bf16.msra.mxu0 0
    %2934 = vmatprep.mubr.bf16.mxu0 0
    %2935 = vmatmul.mubr.bf16.gmra.mrb[0].mxu0 %v1506
    %v2936 = vpop.f32.mrb[0].mxu0
    %v2937 = vadd.f32 %v700, %v2936
    %v2938 = vpop.f32.mrb[0].mxu0
    %v2939 = vadd.f32 %v704, %v2938
    %v2940 = vpop.f32.mrb[0].mxu0
    %v2941 = vpop.f32.mrb[0].mxu0
    %2942 = vdwg.mxu0
    %2943 = vmatprep.subr.bf16.mxu0 %v1288
    %2944 = vmatpush1.bf16.msra.mxu0 %v1287
    %2945 = vmatprep.subr.bf16.mxu0 %v1360
    %2946 = vmatpush1.bf16.msra.mxu0 %v1359
    %2947 = vmatprep.subr.bf16.mxu0 0
    %2948 = vmatpush1.bf16.msra.mxu0 0
    %2949 = vmatprep.subr.bf16.mxu0 0
    %2950 = vmatpush1.bf16.msra.mxu0 0
    %2951 = vmatprep.subr.bf16.mxu0 0
    %2952 = vmatpush1.bf16.msra.mxu0 0
    %2953 = vmatprep.subr.bf16.mxu0 0
    %2954 = vmatpush1.bf16.msra.mxu0 0
    %2955 = vmatprep.subr.bf16.mxu0 0
    %2956 = vmatpush1.bf16.msra.mxu0 0
    %2957 = vmatprep.subr.bf16.mxu0 0
    %2958 = vmatpush1.bf16.msra.mxu0 0
    %2959 = vmatprep.subr.bf16.mxu0 0
    %2960 = vmatpush1.bf16.msra.mxu0 0
    %2961 = vmatprep.subr.bf16.mxu0 0
    %2962 = vmatpush1.bf16.msra.mxu0 0
    %2963 = vmatprep.subr.bf16.mxu0 0
    %2964 = vmatpush1.bf16.msra.mxu0 0
    %2965 = vmatprep.subr.bf16.mxu0 0
    %2966 = vmatpush1.bf16.msra.mxu0 0
    %2967 = vmatprep.subr.bf16.mxu0 0
    %2968 = vmatpush1.bf16.msra.mxu0 0
    %2969 = vmatprep.subr.bf16.mxu0 0
    %2970 = vmatpush1.bf16.msra.mxu0 0
    %2971 = vmatprep.subr.bf16.mxu0 0
    %2972 = vmatpush1.bf16.msra.mxu0 0
    %2973 = vmatprep.subr.bf16.mxu0 0
    %2974 = vmatpush1.bf16.msra.mxu0 0
    %2975 = vmatprep.mubr.bf16.mxu0 0
    %2976 = vmatmul.mubr.bf16.gmra.mrb[0].mxu0 %v1506
    %v2977 = vpop.f32.mrb[0].mxu0
    %v2978 = vadd.f32 %v708, %v2977
    %v2979 = vpop.f32.mrb[0].mxu0
    %v2980 = vadd.f32 %v712, %v2979
    %v2981 = vpop.f32.mrb[0].mxu0
    %v2982 = vpop.f32.mrb[0].mxu0
    %2983 = vdwg.mxu0
    %v3056 = vcombine.low %v1543, %v1545
    %v3057 = vcombine.low %v1584, %v1586
    %v3059 = vunpack.c.l.s4 1983009808
    %v3060 = vunpack.c.0.s8 %v3059
    %v3061 = vlaneseq
    %v3062 = vshrl.u32 %v3061, 7
    %v3063 = vsub.s32 %v3060, %v3062
    %v3064 = vrot.slane %v3056, %v3063
    %v3066 = vunpack.c.l.s4 1983009808
    %v3067 = vunpack.c.0.s8 %v3066
    %v3068 = vlaneseq
    %v3069 = vshrl.u32 %v3068, 7
    %v3070 = vsub.s32 %v3067, %v3069
    %v3071 = vrot.slane %v3057, %v3070
    %v3072 = vcombine.low %v3064, %v3071
    %v3073 = vcombine.low %v1625, %v1627
    %v3074 = vcombine.low %v1666, %v1668
    %v3076 = vunpack.c.l.s4 1983009808
    %v3077 = vunpack.c.0.s8 %v3076
    %v3078 = vlaneseq
    %v3079 = vshrl.u32 %v3078, 7
    %v3080 = vsub.s32 %v3077, %v3079
    %v3081 = vrot.slane %v3073, %v3080
    %v3083 = vunpack.c.l.s4 1983009808
    %v3084 = vunpack.c.0.s8 %v3083
    %v3085 = vlaneseq
    %v3086 = vshrl.u32 %v3085, 7
    %v3087 = vsub.s32 %v3084, %v3086
    %v3088 = vrot.slane %v3074, %v3087
    %v3089 = vcombine.low %v3081, %v3088
    %v3090 = vcombine.low %v1707, %v1709
    %v3091 = vcombine.low %v1748, %v1750
    %v3093 = vunpack.c.l.s4 1983009808
    %v3094 = vunpack.c.0.s8 %v3093
    %v3095 = vlaneseq
    %v3096 = vshrl.u32 %v3095, 7
    %v3097 = vsub.s32 %v3094, %v3096
    %v3098 = vrot.slane %v3090, %v3097
    %v3100 = vunpack.c.l.s4 1983009808
    %v3101 = vunpack.c.0.s8 %v3100
    %v3102 = vlaneseq
    %v3103 = vshrl.u32 %v3102, 7
    %v3104 = vsub.s32 %v3101, %v3103
    %v3105 = vrot.slane %v3091, %v3104
    %v3106 = vcombine.low %v3098, %v3105
    %v3107 = vcombine.low %v1789, %v1791
    %v3108 = vcombine.low %v1830, %v1832
    %v3110 = vunpack.c.l.s4 1983009808
    %v3111 = vunpack.c.0.s8 %v3110
    %v3112 = vlaneseq
    %v3113 = vshrl.u32 %v3112, 7
    %v3114 = vsub.s32 %v3111, %v3113
    %v3115 = vrot.slane %v3107, %v3114
    %v3117 = vunpack.c.l.s4 1983009808
    %v3118 = vunpack.c.0.s8 %v3117
    %v3119 = vlaneseq
    %v3120 = vshrl.u32 %v3119, 7
    %v3121 = vsub.s32 %v3118, %v3120
    %v3122 = vrot.slane %v3108, %v3121
    %v3123 = vcombine.low %v3115, %v3122
    %v3124 = vcombine.low %v1871, %v1873
    %v3125 = vcombine.low %v1912, %v1914
    %v3127 = vunpack.c.l.s4 1983009808
    %v3128 = vunpack.c.0.s8 %v3127
    %v3129 = vlaneseq
    %v3130 = vshrl.u32 %v3129, 7
    %v3131 = vsub.s32 %v3128, %v3130
    %v3132 = vrot.slane %v3124, %v3131
    %v3134 = vunpack.c.l.s4 1983009808
    %v3135 = vunpack.c.0.s8 %v3134
    %v3136 = vlaneseq
    %v3137 = vshrl.u32 %v3136, 7
    %v3138 = vsub.s32 %v3135, %v3137
    %v3139 = vrot.slane %v3125, %v3138
    %v3140 = vcombine.low %v3132, %v3139
    %v3141 = vcombine.low %v1953, %v1955
    %v3142 = vcombine.low %v1994, %v1996
    %v3144 = vunpack.c.l.s4 1983009808
    %v3145 = vunpack.c.0.s8 %v3144
    %v3146 = vlaneseq
    %v3147 = vshrl.u32 %v3146, 7
    %v3148 = vsub.s32 %v3145, %v3147
    %v3149 = vrot.slane %v3141, %v3148
    %v3151 = vunpack.c.l.s4 1983009808
    %v3152 = vunpack.c.0.s8 %v3151
    %v3153 = vlaneseq
    %v3154 = vshrl.u32 %v3153, 7
    %v3155 = vsub.s32 %v3152, %v3154
    %v3156 = vrot.slane %v3142, %v3155
    %v3157 = vcombine.low %v3149, %v3156
    %v3158 = vcombine.low %v2035, %v2037
    %v3159 = vcombine.low %v2076, %v2078
    %v3161 = vunpack.c.l.s4 1983009808
    %v3162 = vunpack.c.0.s8 %v3161
    %v3163 = vlaneseq
    %v3164 = vshrl.u32 %v3163, 7
    %v3165 = vsub.s32 %v3162, %v3164
    %v3166 = vrot.slane %v3158, %v3165
    %v3168 = vunpack.c.l.s4 1983009808
    %v3169 = vunpack.c.0.s8 %v3168
    %v3170 = vlaneseq
    %v3171 = vshrl.u32 %v3170, 7
    %v3172 = vsub.s32 %v3169, %v3171
    %v3173 = vrot.slane %v3159, %v3172
    %v3174 = vcombine.low %v3166, %v3173
    %v3175 = vcombine.low %v2117, %v2119
    %v3176 = vcombine.low %v2158, %v2160
    %v3178 = vunpack.c.l.s4 1983009808
    %v3179 = vunpack.c.0.s8 %v3178
    %v3180 = vlaneseq
    %v3181 = vshrl.u32 %v3180, 7
    %v3182 = vsub.s32 %v3179, %v3181
    %v3183 = vrot.slane %v3175, %v3182
    %v3185 = vunpack.c.l.s4 1983009808
    %v3186 = vunpack.c.0.s8 %v3185
    %v3187 = vlaneseq
    %v3188 = vshrl.u32 %v3187, 7
    %v3189 = vsub.s32 %v3186, %v3188
    %v3190 = vrot.slane %v3176, %v3189
    %v3191 = vcombine.low %v3183, %v3190
    %v3192 = vcombine.low %v2199, %v2201
    %v3193 = vcombine.low %v2240, %v2242
    %v3195 = vunpack.c.l.s4 1983009808
    %v3196 = vunpack.c.0.s8 %v3195
    %v3197 = vlaneseq
    %v3198 = vshrl.u32 %v3197, 7
    %v3199 = vsub.s32 %v3196, %v3198
    %v3200 = vrot.slane %v3192, %v3199
    %v3202 = vunpack.c.l.s4 1983009808
    %v3203 = vunpack.c.0.s8 %v3202
    %v3204 = vlaneseq
    %v3205 = vshrl.u32 %v3204, 7
    %v3206 = vsub.s32 %v3203, %v3205
    %v3207 = vrot.slane %v3193, %v3206
    %v3208 = vcombine.low %v3200, %v3207
    %v3209 = vcombine.low %v2281, %v2283
    %v3210 = vcombine.low %v2322, %v2324
    %v3212 = vunpack.c.l.s4 1983009808
    %v3213 = vunpack.c.0.s8 %v3212
    %v3214 = vlaneseq
    %v3215 = vshrl.u32 %v3214, 7
    %v3216 = vsub.s32 %v3213, %v3215
    %v3217 = vrot.slane %v3209, %v3216
    %v3219 = vunpack.c.l.s4 1983009808
    %v3220 = vunpack.c.0.s8 %v3219
    %v3221 = vlaneseq
    %v3222 = vshrl.u32 %v3221, 7
    %v3223 = vsub.s32 %v3220, %v3222
    %v3224 = vrot.slane %v3210, %v3223
    %v3225 = vcombine.low %v3217, %v3224
    %v3226 = vcombine.low %v2363, %v2365
    %v3227 = vcombine.low %v2404, %v2406
    %v3229 = vunpack.c.l.s4 1983009808
    %v3230 = vunpack.c.0.s8 %v3229
    %v3231 = vlaneseq
    %v3232 = vshrl.u32 %v3231, 7
    %v3233 = vsub.s32 %v3230, %v3232
    %v3234 = vrot.slane %v3226, %v3233
    %v3236 = vunpack.c.l.s4 1983009808
    %v3237 = vunpack.c.0.s8 %v3236
    %v3238 = vlaneseq
    %v3239 = vshrl.u32 %v3238, 7
    %v3240 = vsub.s32 %v3237, %v3239
    %v3241 = vrot.slane %v3227, %v3240
    %v3242 = vcombine.low %v3234, %v3241
    %v3243 = vcombine.low %v2445, %v2447
    %v3244 = vcombine.low %v2486, %v2488
    %v3246 = vunpack.c.l.s4 1983009808
    %v3247 = vunpack.c.0.s8 %v3246
    %v3248 = vlaneseq
    %v3249 = vshrl.u32 %v3248, 7
    %v3250 = vsub.s32 %v3247, %v3249
    %v3251 = vrot.slane %v3243, %v3250
    %v3253 = vunpack.c.l.s4 1983009808
    %v3254 = vunpack.c.0.s8 %v3253
    %v3255 = vlaneseq
    %v3256 = vshrl.u32 %v3255, 7
    %v3257 = vsub.s32 %v3254, %v3256
    %v3258 = vrot.slane %v3244, %v3257
    %v3259 = vcombine.low %v3251, %v3258
    %v3260 = vcombine.low %v2527, %v2529
    %v3261 = vcombine.low %v2568, %v2570
    %v3263 = vunpack.c.l.s4 1983009808
    %v3264 = vunpack.c.0.s8 %v3263
    %v3265 = vlaneseq
    %v3266 = vshrl.u32 %v3265, 7
    %v3267 = vsub.s32 %v3264, %v3266
    %v3268 = vrot.slane %v3260, %v3267
    %v3270 = vunpack.c.l.s4 1983009808
    %v3271 = vunpack.c.0.s8 %v3270
    %v3272 = vlaneseq
    %v3273 = vshrl.u32 %v3272, 7
    %v3274 = vsub.s32 %v3271, %v3273
    %v3275 = vrot.slane %v3261, %v3274
    %v3276 = vcombine.low %v3268, %v3275
    %v3277 = vcombine.low %v2609, %v2611
    %v3278 = vcombine.low %v2650, %v2652
    %v3280 = vunpack.c.l.s4 1983009808
    %v3281 = vunpack.c.0.s8 %v3280
    %v3282 = vlaneseq
    %v3283 = vshrl.u32 %v3282, 7
    %v3284 = vsub.s32 %v3281, %v3283
    %v3285 = vrot.slane %v3277, %v3284
    %v3287 = vunpack.c.l.s4 1983009808
    %v3288 = vunpack.c.0.s8 %v3287
    %v3289 = vlaneseq
    %v3290 = vshrl.u32 %v3289, 7
    %v3291 = vsub.s32 %v3288, %v3290
    %v3292 = vrot.slane %v3278, %v3291
    %v3293 = vcombine.low %v3285, %v3292
    %v3294 = vcombine.low %v2691, %v2693
    %v3295 = vcombine.low %v2732, %v2734
    %v3297 = vunpack.c.l.s4 1983009808
    %v3298 = vunpack.c.0.s8 %v3297
    %v3299 = vlaneseq
    %v3300 = vshrl.u32 %v3299, 7
    %v3301 = vsub.s32 %v3298, %v3300
    %v3302 = vrot.slane %v3294, %v3301
    %v3304 = vunpack.c.l.s4 1983009808
    %v3305 = vunpack.c.0.s8 %v3304
    %v3306 = vlaneseq
    %v3307 = vshrl.u32 %v3306, 7
    %v3308 = vsub.s32 %v3305, %v3307
    %v3309 = vrot.slane %v3295, %v3308
    %v3310 = vcombine.low %v3302, %v3309
    %v3311 = vcombine.low %v2773, %v2775
    %v3312 = vcombine.low %v2814, %v2816
    %v3314 = vunpack.c.l.s4 1983009808
    %v3315 = vunpack.c.0.s8 %v3314
    %v3316 = vlaneseq
    %v3317 = vshrl.u32 %v3316, 7
    %v3318 = vsub.s32 %v3315, %v3317
    %v3319 = vrot.slane %v3311, %v3318
    %v3321 = vunpack.c.l.s4 1983009808
    %v3322 = vunpack.c.0.s8 %v3321
    %v3323 = vlaneseq
    %v3324 = vshrl.u32 %v3323, 7
    %v3325 = vsub.s32 %v3322, %v3324
    %v3326 = vrot.slane %v3312, %v3325
    %v3327 = vcombine.low %v3319, %v3326
    %v3328 = vcombine.low %v2855, %v2857
    %v3329 = vcombine.low %v2896, %v2898
    %v3331 = vunpack.c.l.s4 1983009808
    %v3332 = vunpack.c.0.s8 %v3331
    %v3333 = vlaneseq
    %v3334 = vshrl.u32 %v3333, 7
    %v3335 = vsub.s32 %v3332, %v3334
    %v3336 = vrot.slane %v3328, %v3335
    %v3338 = vunpack.c.l.s4 1983009808
    %v3339 = vunpack.c.0.s8 %v3338
    %v3340 = vlaneseq
    %v3341 = vshrl.u32 %v3340, 7
    %v3342 = vsub.s32 %v3339, %v3341
    %v3343 = vrot.slane %v3329, %v3342
    %v3344 = vcombine.low %v3336, %v3343
    %v3345 = vcombine.low %v2937, %v2939
    %v3346 = vcombine.low %v2978, %v2980
    %v3348 = vunpack.c.l.s4 1983009808
    %v3349 = vunpack.c.0.s8 %v3348
    %v3350 = vlaneseq
    %v3351 = vshrl.u32 %v3350, 7
    %v3352 = vsub.s32 %v3349, %v3351
    %v3353 = vrot.slane %v3345, %v3352
    %v3355 = vunpack.c.l.s4 1983009808
    %v3356 = vunpack.c.0.s8 %v3355
    %v3357 = vlaneseq
    %v3358 = vshrl.u32 %v3357, 7
    %v3359 = vsub.s32 %v3356, %v3358
    %v3360 = vrot.slane %v3346, %v3359
    %v3361 = vcombine.low %v3353, %v3360
    %3380 = vst [vmem:[%s7] sm:$0xff] %v3072
    %3381 = vst [vmem:[%s7 + $0x8] sm:$0xff] %v3089
    %3382 = vst [vmem:[%s7 + $0x10] sm:$0xff] %v3106
    %3383 = vst [vmem:[%s7 + $0x18] sm:$0xff] %v3123
    %3384 = vst [vmem:[%s7 + $0x20] sm:$0xff] %v3140
    %3385 = vst [vmem:[%s7 + $0x28] sm:$0xff] %v3157
    %3386 = vst [vmem:[%s7 + $0x30] sm:$0xff] %v3174
    %3387 = vst [vmem:[%s7 + $0x38] sm:$0xff] %v3191
    %3388 = vst [vmem:[%s7 + $0x40] sm:$0xff] %v3208
    %3389 = vst [vmem:[%s7 + $0x48] sm:$0xff] %v3225
    %3390 = vst [vmem:[%s7 + $0x50] sm:$0xff] %v3242
    %3391 = vst [vmem:[%s7 + $0x58] sm:$0xff] %v3259
    %3392 = vst [vmem:[%s7 + $0x60] sm:$0xff] %v3276
    %3393 = vst [vmem:[%s7 + $0x68] sm:$0xff] %v3293
    %3394 = vst [vmem:[%s7 + $0x70] sm:$0xff] %v3310
    %3395 = vst [vmem:[%s7 + $0x78] sm:$0xff] %v3327
    %3396 = vst [vmem:[%s7 + $0x80] sm:$0xff] %v3344
    %3397 = vst [vmem:[%s7 + $0x88] sm:$0xff] %v3361
    // Predicated region
    $region50: #{shakes_hyper_forward.1} parent=1 // pred_check
      _
    $region51: #{shakes_hyper_forward.1} parent=1 // pred_check_branch
      %3399 = sbr.rel (0) target = $region53
    $region52: #{shakes_hyper_forward.1} parent=1 // pred_region
      _
    $region53: #{shakes_hyper_forward.1} parent=1 // pred_fallthru
      _
    // Predicated region
    $region54: #{shakes_hyper_forward.1} parent=1 // pred_check
      _
    $region55: #{shakes_hyper_forward.1} parent=1 // pred_check_branch
      %3401 = sbr.rel (0) target = $region57
    $region56: #{shakes_hyper_forward.1} parent=1 // pred_region
      _
    $region57: #{shakes_hyper_forward.1} parent=1 // pred_fallthru
      _
    %3402 = vsyncpa [#allocation3], 1
    %3403 = vsyncpa [#allocation5], 1
    %3404 = vsyncpa [#allocation8], 1

</llo_original>
